<compile_context>
chip_gen: v7x
topology: tpu7x:2x2x1
jax: 0.10.0
libtpu: 0.0.40
codegen_flags: <defaults>
</compile_context>

<pallas_src>
import functools

import jax
import jax.numpy as jnp
from jax.experimental import pallas as pl
from jax.experimental.pallas import tpu as pltpu


def _layer_norm(x, gamma, beta, eps=1e-6):
    # x: (M, C) f32, gamma/beta: (1, C) f32 -- matches nn.LayerNorm(dim, eps=1e-6)
    mu = jnp.mean(x, axis=-1, keepdims=True)
    var = jnp.mean(jnp.square(x - mu), axis=-1, keepdims=True)
    return (x - mu) * jax.lax.rsqrt(var + eps) * gamma + beta


def attentive_block_kernel(
    # batch-block inputs
    xq_ref, xkv_ref, pq_ref, pk_ref,
    # LayerNorm affine params, each (1, C), f32
    gq_ref, bq_ref, gk_ref, bk_ref, gv_ref, bv_ref,
    # packed projection weights/biases: (C, C) in MXU dtype, (1, C) f32
    wq_ref, bql_ref, wk_ref, bkl_ref, wv_ref, bvl_ref,
    # output projection: (C, C_out) MXU dtype, (1, C_out) f32
    wp_ref, bpl_ref,
    # output block
    out_ref,
    # VMEM scratch: lane-packed head-merge slab (bb, Nq, C) in MXU dtype
    o_merge_ref,
    *, num_heads, mxu_dtype,
):
    bb, Nq, C = xq_ref.shape
    Nk = xkv_ref.shape[1]
    H = num_heads
    hd = C // H
    C_out = out_ref.shape[-1]
    f32 = jnp.float32

    # ---- LayerNorms (f32 on the VPU), batch-flattened to (bb*N, C). ----
    xq = xq_ref[...].astype(f32).reshape(bb * Nq, C)
    pq = pq_ref[...].astype(f32).reshape(bb * Nq, C)
    xkv = xkv_ref[...].astype(f32).reshape(bb * Nk, C)
    pk = pk_ref[...].astype(f32).reshape(bb * Nk, C)

    q_in = _layer_norm(xq + pq, gq_ref[...], bq_ref[...]).astype(mxu_dtype)   # norm1_q(x_q + pos_q)
    k_in = _layer_norm(xkv + pk, gk_ref[...], bk_ref[...]).astype(mxu_dtype)  # norm1_k(x_kv + pos_k)
    v_in = _layer_norm(xkv, gv_ref[...], bv_ref[...]).astype(mxu_dtype)       # norm1_v(x_kv)

    # ---- Full-width packed projections: one (M, C) @ (C, C) MXU matmul each,
    #      f32 accumulation.  qk-scale is already folded into wq / bql. ----
    q2d = jnp.dot(q_in, wq_ref[...], preferred_element_type=f32) + bql_ref[...]
    k2d = jnp.dot(k_in, wk_ref[...], preferred_element_type=f32) + bkl_ref[...]
    v2d = jnp.dot(v_in, wv_ref[...], preferred_element_type=f32) + bvl_ref[...]

    # ---- Head split: (bb*N, H*hd) -> (H*bb, N, hd), batch index z = h*bb + b.
    #      Single-pass lane-slice relayout (no H-way activation broadcast,
    #      no per-batch loop around the attention compute itself). ----
    def split_heads(x2d, n):
        x2d = x2d.astype(mxu_dtype)
        parts = [x2d[:, h * hd:(h + 1) * hd].reshape(bb, n, hd) for h in range(H)]
        return jnp.concatenate(parts, axis=0)                 # (H*bb, n, hd)

    qh = split_heads(q2d, Nq)
    kh = split_heads(k2d, Nk)
    vh = split_heads(v2d, Nk)

    # ---- Attention: single (H*bb)-batched dot_general per stage; softmax
    #      statistics stay f32, denominator via the EUP approximate recip. ----
    s = jnp.einsum("zqd,zkd->zqk", qh, kh, preferred_element_type=f32)  # (Z, Nq, Nk)
    s = s - jnp.max(s, axis=-1, keepdims=True)
    e = jnp.exp(s)
    p = e * pl.reciprocal(jnp.sum(e, axis=-1, keepdims=True), approx=True)
    o = jnp.einsum("zqk,zkd->zqd", p.astype(mxu_dtype), vh,
                   preferred_element_type=f32)                          # (Z, Nq, hd)

    # ---- Head merge into a lane-packed (bb*Nq, C) slab (scratch stores) so
    #      the output projection is a single (M, C) @ (C, C_out) MXU matmul:
    #      the head reduction happens inside the systolic array (K = C). ----
    o4 = o.astype(mxu_dtype).reshape(H, bb, Nq, hd)
    for h in range(H):
        o_merge_ref[:, :, h * hd:(h + 1) * hd] = o4[h]
    o2d = o_merge_ref[...].reshape(bb * Nq, C)

    out = jnp.dot(o2d, wp_ref[...], preferred_element_type=f32) + bpl_ref[...]
    out_ref[...] = out.reshape(bb, Nq, C_out).astype(out_ref.dtype)


def _tpu_vmem_capacity_bytes(default=64 * 1024 * 1024):
    try:
        info = pltpu.get_tpu_info()
        return int(getattr(info, "vmem_capacity_bytes", default))
    except Exception:
        return default


def _num_tensorcores_per_chip():
    # v7x packs 2 TensorCores per chip; v5e / v6e expose 1.
    try:
        dev = jax.devices()[0]
        nc = getattr(dev, "num_cores", None)
        if nc:
            return int(nc)
        kind = str(getattr(dev, "device_kind", "")).lower()
        return 2 if "7" in kind else 1
    except Exception:
        return 1


def _pick_batch_block(B, per_sample_bytes, budget_bytes, min_grid_steps=1):
    divisors = [d for d in range(1, B + 1) if B % d == 0]
    fits = [d for d in divisors if d * per_sample_bytes <= budget_bytes] or [1]
    # Largest fitting block: amortizes per-grid-step pipeline overhead on the
    # single-TC chips (v5e / v6e, where the grid is a serial loop).
    bb = fits[-1]
    # ...but keep >= min_grid_steps steps so the "parallel" batch axis can be
    # sharded across TensorCores (v7x has two per chip).
    cap = max(1, B // max(1, min_grid_steps))
    smaller = [d for d in fits if d <= cap]
    if smaller:
        bb = smaller[-1]
    return bb


def attentive_block(x_q, x_kv, pos_q, pos_k, params, *, num_heads,
                    qk_scale=None, mxu_dtype=jnp.bfloat16, batch_block=None):
    B, Nq, C = x_q.shape
    Nk = x_kv.shape[1]
    C_out = params["wp"].shape[1]
    assert C % num_heads == 0
    hd = C // num_heads
    scale = qk_scale if qk_scale is not None else hd ** -0.5
    f32 = jnp.float32

    # ---- One-time parameter repack (plain XLA, outside the kernel) --------
    #  * qk-scale folded into wq / bql  (removes a VPU pass over (M, C)/step)
    #  * MXU operands pre-cast to mxu_dtype (bf16 by default): halves weight
    #    VMEM residency & HBM traffic, several-x MXU throughput.  LN params
    #    and all biases stay f32 so LN / softmax / accumulation stay f32.
    wq = (params["wq"].astype(f32) * scale).astype(mxu_dtype)
    wk = params["wk"].astype(mxu_dtype)
    wv = params["wv"].astype(mxu_dtype)
    wp = params["wp"].astype(mxu_dtype)
    bql = params["bql"].astype(f32) * scale
    bkl = params["bkl"].astype(f32)
    bvl = params["bvl"].astype(f32)
    bpl = params["bpl"].astype(f32)
    gq, bq = params["gq"].astype(f32), params["bq"].astype(f32)
    gk, bk = params["gk"].astype(f32), params["bk"].astype(f32)
    gv, bv = params["gv"].astype(f32), params["bv"].astype(f32)

    # ---- Generation-aware batch-block / grid / VMEM sizing ----------------
    mxu_bytes = jnp.dtype(mxu_dtype).itemsize
    vmem_cap = _tpu_vmem_capacity_bytes()                       # 64 MiB on v7x, 128 MiB v5e/v6e
    vmem_limit = int(min(vmem_cap * 3 // 4, 96 * 1024 * 1024))  # raise v5e's 16 MiB default
    weight_bytes = (3 * C * C + C * C_out) * mxu_bytes + 10 * C * 4
    budget = max(vmem_limit - weight_bytes - (2 << 20), 1 << 20)
    per_sample = (
        2 * 2 * (Nq + Nk) * C * 4                       # x / pos inputs, double-buffered
        + (Nq + 2 * Nk) * C * (4 + mxu_bytes)           # q/k/v f32 acc + head-split copies
        + 2 * num_heads * Nq * Nk * 4                   # logits + softmax temporaries
        + Nq * C * (4 + mxu_bytes)                      # PV result + merged slab
        + 2 * 2 * Nq * C_out * 4                        # f32 result + output block
    )
    if batch_block is None:
        bb = _pick_batch_block(B, per_sample, budget,
                               min_grid_steps=_num_tensorcores_per_chip())
    else:
        bb = batch_block
        assert B % bb == 0
    grid = (B // bb,)

    # ---- BlockSpecs --------------------------------------------------------
    # Constant-index parameters never change across grid steps: single-buffer
    # them so they don't pay 2x VMEM residency.
    buf1 = {"pipeline_mode": pl.Buffered(1)} if hasattr(pl, "Buffered") else {}

    def const_spec(*shape):
        return pl.BlockSpec(shape, lambda i: (0,) * len(shape), **buf1)

    seq_q = pl.BlockSpec((bb, Nq, C), lambda i: (i, 0, 0))
    seq_k = pl.BlockSpec((bb, Nk, C), lambda i: (i, 0, 0))
    # TODO(synk): for tiny C_out this store is a masked vst; if toy shapes are
    # representative, present a batch-flattened lane-dense (B*Nq, C_out) slab.
    out_s = pl.BlockSpec((bb, Nq, C_out), lambda i: (i, 0, 0))

    kernel = functools.partial(attentive_block_kernel,
                               num_heads=num_heads, mxu_dtype=mxu_dtype)

    return pl.pallas_call(
        kernel,
        out_shape=jax.ShapeDtypeStruct((B, Nq, C_out), x_q.dtype),
        grid_spec=pltpu.PrefetchScalarGridSpec(
            num_scalar_prefetch=0,
            grid=grid,
            in_specs=[
                seq_q, seq_k, seq_q, seq_k,                    # x_q, x_kv, pos_q, pos_k
                const_spec(1, C), const_spec(1, C),            # gq, bq
                const_spec(1, C), const_spec(1, C),            # gk, bk
                const_spec(1, C), const_spec(1, C),            # gv, bv
                const_spec(C, C), const_spec(1, C),            # wq (scale folded), bql (scaled)
                const_spec(C, C), const_spec(1, C),            # wk, bkl
                const_spec(C, C), const_spec(1, C),            # wv, bvl
                const_spec(C, C_out), const_spec(1, C_out),    # wp, bpl
            ],
            out_specs=out_s,
            scratch_shapes=[pltpu.VMEM((bb, Nq, C), mxu_dtype)],  # head-merge slab
        ),
        compiler_params=pltpu.CompilerParams(
            dimension_semantics=("parallel",),
            vmem_limit_bytes=vmem_limit,
        ),
    )(
        x_q, x_kv, pos_q, pos_k,
        gq, bq, gk, bk, gv, bv,
        wq, bql, wk, bkl, wv, bvl,
        wp, bpl,
    )


def attentive_block_ref(x_q, x_kv, pos_q, pos_k, params, *, num_heads, qk_scale=None):
    """Pure-JAX f32 reference mirroring the PyTorch forward."""
    C = x_q.shape[-1]
    hd = C // num_heads
    scale = qk_scale if qk_scale is not None else hd ** -0.5

    def ln(x, g, b):
        mu = jnp.mean(x, axis=-1, keepdims=True)
        var = jnp.mean((x - mu) ** 2, axis=-1, keepdims=True)
        return (x - mu) / jnp.sqrt(var + 1e-6) * g + b

    q_in = ln(x_q + pos_q, params["gq"], params["bq"])
    k_in = ln(x_kv + pos_k, params["gk"], params["bk"])
    v_in = ln(x_kv, params["gv"], params["bv"])

    q = q_in @ params["wq"] + params["bql"]
    k = k_in @ params["wk"] + params["bkl"]
    v = v_in @ params["wv"] + params["bvl"]

    B, Nq, _ = q.shape
    Nk = k.shape[1]
    qh = q.reshape(B, Nq, num_heads, hd).transpose(0, 2, 1, 3)
    kh = k.reshape(B, Nk, num_heads, hd).transpose(0, 2, 1, 3)
    vh = v.reshape(B, Nk, num_heads, hd).transpose(0, 2, 1, 3)

    attn = jnp.einsum("bhnd,bhmd->bhnm", qh, kh) * scale
    attn = jax.nn.softmax(attn, axis=-1)
    o = jnp.einsum("bhnm,bhmd->bhnd", attn, vh)
    o = o.transpose(0, 2, 1, 3).reshape(B, Nq, C)
    return o @ params["wp"] + params["bpl"]


def make_params(key, dim, out_dim, dtype=jnp.float32):
    ks = jax.random.split(key, 8)
    s = 0.02
    return {
        # LayerNorm affine params (identity-ish but perturbed so they matter)
        "gq": jnp.ones((1, dim), dtype) + s * jax.random.normal(ks[0], (1, dim), dtype),
        "bq": s * jax.random.normal(ks[1], (1, dim), dtype),
        "gk": jnp.ones((1, dim), dtype) + s * jax.random.normal(ks[2], (1, dim), dtype),
        "bk": s * jax.random.normal(ks[3], (1, dim), dtype),
        "gv": jnp.ones((1, dim), dtype),
        "bv": jnp.zeros((1, dim), dtype),
        # q/k/v linears (weights stored as (C_in, C_out)); qkv_bias=True variant
        "wq": s * jax.random.normal(ks[4], (dim, dim), dtype),
        "bql": jnp.zeros((1, dim), dtype),
        "wk": s * jax.random.normal(ks[5], (dim, dim), dtype),
        "bkl": jnp.zeros((1, dim), dtype),
        "wv": s * jax.random.normal(ks[6], (dim, dim), dtype),
        "bvl": jnp.zeros((1, dim), dtype),
        # output projection (always has a bias in nn.Linear)
        "wp": s * jax.random.normal(ks[7], (dim, out_dim), dtype),
        "bpl": 0.01 * jnp.ones((1, out_dim), dtype),
    }


if __name__ == "__main__":
    B, Nq, Nk, C, H = 2, 8, 16, 32, 4
    out_dim = C  # out_dim=None in the module -> same as dim

    key = jax.random.PRNGKey(0)
    k1, k2, k3, k4, kp = jax.random.split(key, 5)
    x_q = jax.random.normal(k1, (B, Nq, C), jnp.float32)
    x_kv = jax.random.normal(k2, (B, Nk, C), jnp.float32)
    pos_q = 0.1 * jax.random.normal(k3, (B, Nq, C), jnp.float32)
    pos_k = 0.1 * jax.random.normal(k4, (B, Nk, C), jnp.float32)
    params = make_params(kp, C, out_dim)

    ref = attentive_block_ref(x_q, x_kv, pos_q, pos_k, params, num_heads=H)

    # f32-MXU path: tight check against the PyTorch-equivalent reference
    # (tolerance covers the EUP approximate-reciprocal softmax denominator).
    out_f32 = jax.block_until_ready(
        attentive_block(x_q, x_kv, pos_q, pos_k, params, num_heads=H,
                        mxu_dtype=jnp.float32))
    assert out_f32.shape == (B, Nq, out_dim)
    assert jnp.allclose(out_f32, ref, atol=1e-3, rtol=1e-3), "f32 mismatch vs reference"

    # bf16-MXU path (default): bf16 operands, f32 LN / softmax / accumulation.
    out_bf16 = jax.block_until_ready(
        attentive_block(x_q, x_kv, pos_q, pos_k, params, num_heads=H))
    assert out_bf16.shape == (B, Nq, out_dim)
    assert jnp.allclose(out_bf16, ref, atol=5e-3, rtol=5e-3), "bf16 mismatch vs reference"

    print("KERNEL_OK")
</pallas_src>

<mosaic_0001>
module attributes {stable_mosaic.version = 11 : i64} {
  func.func @attentive_block_kernel(%arg0: i32, %arg1: memref<2x8x32xf32, #tpu.memory_space<vmem>>, %arg2: memref<2x16x32xf32, #tpu.memory_space<vmem>>, %arg3: memref<2x8x32xf32, #tpu.memory_space<vmem>>, %arg4: memref<2x16x32xf32, #tpu.memory_space<vmem>>, %arg5: memref<1x32xf32, #tpu.memory_space<vmem>>, %arg6: memref<1x32xf32, #tpu.memory_space<vmem>>, %arg7: memref<1x32xf32, #tpu.memory_space<vmem>>, %arg8: memref<1x32xf32, #tpu.memory_space<vmem>>, %arg9: memref<1x32xf32, #tpu.memory_space<vmem>>, %arg10: memref<1x32xf32, #tpu.memory_space<vmem>>, %arg11: memref<32x32xf32, #tpu.memory_space<vmem>>, %arg12: memref<1x32xf32, #tpu.memory_space<vmem>>, %arg13: memref<32x32xf32, #tpu.memory_space<vmem>>, %arg14: memref<1x32xf32, #tpu.memory_space<vmem>>, %arg15: memref<32x32xf32, #tpu.memory_space<vmem>>, %arg16: memref<1x32xf32, #tpu.memory_space<vmem>>, %arg17: memref<32x32xf32, #tpu.memory_space<vmem>>, %arg18: memref<1x32xf32, #tpu.memory_space<vmem>>, %arg19: memref<2x8x32xf32, #tpu.memory_space<vmem>>, %arg20: memref<2x8x32xf32, #tpu.memory_space<vmem>>) attributes {dimension_semantics = [#tpu.dimension_semantics<parallel>], iteration_bounds = array<i64: 1>, scalar_prefetch = 0 : i64, scratch_operands = 1 : i64, tpu.core_type = #tpu.core_type<tc>, window_params = [{transform_indices = @transform_0, window_bounds = array<i64: 2, 8, 32>}, {transform_indices = @transform_1, window_bounds = array<i64: 2, 16, 32>}, {transform_indices = @transform_2, window_bounds = array<i64: 2, 8, 32>}, {transform_indices = @transform_3, window_bounds = array<i64: 2, 16, 32>}, {pipeline_mode = #tpu.pipeline_mode<synchronous>, transform_indices = @transform_4, window_bounds = array<i64: 1, 32>}, {pipeline_mode = #tpu.pipeline_mode<synchronous>, transform_indices = @transform_5, window_bounds = array<i64: 1, 32>}, {pipeline_mode = #tpu.pipeline_mode<synchronous>, transform_indices = @transform_6, window_bounds = array<i64: 1, 32>}, {pipeline_mode = #tpu.pipeline_mode<synchronous>, transform_indices = @transform_7, window_bounds = array<i64: 1, 32>}, {pipeline_mode = #tpu.pipeline_mode<synchronous>, transform_indices = @transform_8, window_bounds = array<i64: 1, 32>}, {pipeline_mode = #tpu.pipeline_mode<synchronous>, transform_indices = @transform_9, window_bounds = array<i64: 1, 32>}, {pipeline_mode = #tpu.pipeline_mode<synchronous>, transform_indices = @transform_10, window_bounds = array<i64: 32, 32>}, {pipeline_mode = #tpu.pipeline_mode<synchronous>, transform_indices = @transform_11, window_bounds = array<i64: 1, 32>}, {pipeline_mode = #tpu.pipeline_mode<synchronous>, transform_indices = @transform_12, window_bounds = array<i64: 32, 32>}, {pipeline_mode = #tpu.pipeline_mode<synchronous>, transform_indices = @transform_13, window_bounds = array<i64: 1, 32>}, {pipeline_mode = #tpu.pipeline_mode<synchronous>, transform_indices = @transform_14, window_bounds = array<i64: 32, 32>}, {pipeline_mode = #tpu.pipeline_mode<synchronous>, transform_indices = @transform_15, window_bounds = array<i64: 1, 32>}, {pipeline_mode = #tpu.pipeline_mode<synchronous>, transform_indices = @transform_16, window_bounds = array<i64: 32, 32>}, {pipeline_mode = #tpu.pipeline_mode<synchronous>, transform_indices = @transform_17, window_bounds = array<i64: 1, 32>}, {transform_indices = @transform_18, window_bounds = array<i64: 2, 8, 32>}]} {
    %c0 = arith.constant 0 : index
    %c0_0 = arith.constant 0 : index
    %c0_1 = arith.constant 0 : index
    %0 = vector.load %arg1[%c0, %c0_0, %c0_1] : memref<2x8x32xf32, #tpu.memory_space<vmem>>, vector<2x8x32xf32>
    %1 = vector.shape_cast %0 : vector<2x8x32xf32> to vector<16x32xf32>
    %c0_2 = arith.constant 0 : index
    %c0_3 = arith.constant 0 : index
    %c0_4 = arith.constant 0 : index
    %2 = vector.load %arg3[%c0_2, %c0_3, %c0_4] : memref<2x8x32xf32, #tpu.memory_space<vmem>>, vector<2x8x32xf32>
    %3 = vector.shape_cast %2 : vector<2x8x32xf32> to vector<16x32xf32>
    %c0_5 = arith.constant 0 : index
    %c0_6 = arith.constant 0 : index
    %c0_7 = arith.constant 0 : index
    %4 = vector.load %arg2[%c0_5, %c0_6, %c0_7] : memref<2x16x32xf32, #tpu.memory_space<vmem>>, vector<2x16x32xf32>
    %5 = vector.shape_cast %4 : vector<2x16x32xf32> to vector<32x32xf32>
    %c0_8 = arith.constant 0 : index
    %c0_9 = arith.constant 0 : index
    %c0_10 = arith.constant 0 : index
    %6 = vector.load %arg4[%c0_8, %c0_9, %c0_10] : memref<2x16x32xf32, #tpu.memory_space<vmem>>, vector<2x16x32xf32>
    %7 = vector.shape_cast %6 : vector<2x16x32xf32> to vector<32x32xf32>
    %8 = arith.addf %1, %3 : vector<16x32xf32>
    %c0_11 = arith.constant 0 : index
    %c0_12 = arith.constant 0 : index
    %9 = vector.load %arg5[%c0_11, %c0_12] : memref<1x32xf32, #tpu.memory_space<vmem>>, vector<1x32xf32>
    %c0_13 = arith.constant 0 : index
    %c0_14 = arith.constant 0 : index
    %10 = vector.load %arg6[%c0_13, %c0_14] : memref<1x32xf32, #tpu.memory_space<vmem>>, vector<1x32xf32>
    %cst = arith.constant dense<0.000000e+00> : vector<16xf32>
    %11 = vector.multi_reduction <add>, %8, %cst [1] : vector<16x32xf32> to vector<16xf32>
    %12 = vector.shape_cast %11 : vector<16xf32> to vector<16x1xf32>
    %cst_15 = arith.constant 3.200000e+01 : f32
    %13 = vector.broadcast %cst_15 : f32 to vector<16x1xf32>
    %14 = arith.divf %12, %13 : vector<16x1xf32>
    %15 = vector.broadcast %14 : vector<16x1xf32> to vector<16x32xf32>
    %16 = arith.subf %8, %15 : vector<16x32xf32>
    %17 = arith.mulf %16, %16 : vector<16x32xf32>
    %cst_16 = arith.constant dense<0.000000e+00> : vector<16xf32>
    %18 = vector.multi_reduction <add>, %17, %cst_16 [1] : vector<16x32xf32> to vector<16xf32>
    %19 = vector.shape_cast %18 : vector<16xf32> to vector<16x1xf32>
    %cst_17 = arith.constant 3.200000e+01 : f32
    %20 = vector.broadcast %cst_17 : f32 to vector<16x1xf32>
    %21 = arith.divf %19, %20 : vector<16x1xf32>
    %22 = vector.broadcast %14 : vector<16x1xf32> to vector<16x32xf32>
    %23 = arith.subf %8, %22 : vector<16x32xf32>
    %cst_18 = arith.constant 9.99999997E-7 : f32
    %24 = vector.broadcast %cst_18 : f32 to vector<16x1xf32>
    %25 = arith.addf %21, %24 : vector<16x1xf32>
    %26 = math.rsqrt %25 : vector<16x1xf32>
    %27 = vector.broadcast %26 : vector<16x1xf32> to vector<16x32xf32>
    %28 = arith.mulf %23, %27 : vector<16x32xf32>
    %29 = vector.broadcast %9 : vector<1x32xf32> to vector<16x32xf32>
    %30 = arith.mulf %28, %29 : vector<16x32xf32>
    %31 = vector.broadcast %10 : vector<1x32xf32> to vector<16x32xf32>
    %32 = arith.addf %30, %31 : vector<16x32xf32>
    %33 = arith.addf %5, %7 : vector<32x32xf32>
    %c0_19 = arith.constant 0 : index
    %c0_20 = arith.constant 0 : index
    %34 = vector.load %arg7[%c0_19, %c0_20] : memref<1x32xf32, #tpu.memory_space<vmem>>, vector<1x32xf32>
    %c0_21 = arith.constant 0 : index
    %c0_22 = arith.constant 0 : index
    %35 = vector.load %arg8[%c0_21, %c0_22] : memref<1x32xf32, #tpu.memory_space<vmem>>, vector<1x32xf32>
    %cst_23 = arith.constant dense<0.000000e+00> : vector<32xf32>
    %36 = vector.multi_reduction <add>, %33, %cst_23 [1] : vector<32x32xf32> to vector<32xf32>
    %37 = vector.shape_cast %36 : vector<32xf32> to vector<32x1xf32>
    %cst_24 = arith.constant 3.200000e+01 : f32
    %38 = vector.broadcast %cst_24 : f32 to vector<32x1xf32>
    %39 = arith.divf %37, %38 : vector<32x1xf32>
    %40 = vector.broadcast %39 : vector<32x1xf32> to vector<32x32xf32>
    %41 = arith.subf %33, %40 : vector<32x32xf32>
    %42 = arith.mulf %41, %41 : vector<32x32xf32>
    %cst_25 = arith.constant dense<0.000000e+00> : vector<32xf32>
    %43 = vector.multi_reduction <add>, %42, %cst_25 [1] : vector<32x32xf32> to vector<32xf32>
    %44 = vector.shape_cast %43 : vector<32xf32> to vector<32x1xf32>
    %cst_26 = arith.constant 3.200000e+01 : f32
    %45 = vector.broadcast %cst_26 : f32 to vector<32x1xf32>
    %46 = arith.divf %44, %45 : vector<32x1xf32>
    %47 = vector.broadcast %39 : vector<32x1xf32> to vector<32x32xf32>
    %48 = arith.subf %33, %47 : vector<32x32xf32>
    %cst_27 = arith.constant 9.99999997E-7 : f32
    %49 = vector.broadcast %cst_27 : f32 to vector<32x1xf32>
    %50 = arith.addf %46, %49 : vector<32x1xf32>
    %51 = math.rsqrt %50 : vector<32x1xf32>
    %52 = vector.broadcast %51 : vector<32x1xf32> to vector<32x32xf32>
    %53 = arith.mulf %48, %52 : vector<32x32xf32>
    %54 = vector.broadcast %34 : vector<1x32xf32> to vector<32x32xf32>
    %55 = arith.mulf %53, %54 : vector<32x32xf32>
    %56 = vector.broadcast %35 : vector<1x32xf32> to vector<32x32xf32>
    %57 = arith.addf %55, %56 : vector<32x32xf32>
    %c0_28 = arith.constant 0 : index
    %c0_29 = arith.constant 0 : index
    %58 = vector.load %arg9[%c0_28, %c0_29] : memref<1x32xf32, #tpu.memory_space<vmem>>, vector<1x32xf32>
    %c0_30 = arith.constant 0 : index
    %c0_31 = arith.constant 0 : index
    %59 = vector.load %arg10[%c0_30, %c0_31] : memref<1x32xf32, #tpu.memory_space<vmem>>, vector<1x32xf32>
    %cst_32 = arith.constant dense<0.000000e+00> : vector<32xf32>
    %60 = vector.multi_reduction <add>, %5, %cst_32 [1] : vector<32x32xf32> to vector<32xf32>
    %61 = vector.shape_cast %60 : vector<32xf32> to vector<32x1xf32>
    %cst_33 = arith.constant 3.200000e+01 : f32
    %62 = vector.broadcast %cst_33 : f32 to vector<32x1xf32>
    %63 = arith.divf %61, %62 : vector<32x1xf32>
    %64 = vector.broadcast %63 : vector<32x1xf32> to vector<32x32xf32>
    %65 = arith.subf %5, %64 : vector<32x32xf32>
    %66 = arith.mulf %65, %65 : vector<32x32xf32>
    %cst_34 = arith.constant dense<0.000000e+00> : vector<32xf32>
    %67 = vector.multi_reduction <add>, %66, %cst_34 [1] : vector<32x32xf32> to vector<32xf32>
    %68 = vector.shape_cast %67 : vector<32xf32> to vector<32x1xf32>
    %cst_35 = arith.constant 3.200000e+01 : f32
    %69 = vector.broadcast %cst_35 : f32 to vector<32x1xf32>
    %70 = arith.divf %68, %69 : vector<32x1xf32>
    %71 = vector.broadcast %63 : vector<32x1xf32> to vector<32x32xf32>
    %72 = arith.subf %5, %71 : vector<32x32xf32>
    %cst_36 = arith.constant 9.99999997E-7 : f32
    %73 = vector.broadcast %cst_36 : f32 to vector<32x1xf32>
    %74 = arith.addf %70, %73 : vector<32x1xf32>
    %75 = math.rsqrt %74 : vector<32x1xf32>
    %76 = vector.broadcast %75 : vector<32x1xf32> to vector<32x32xf32>
    %77 = arith.mulf %72, %76 : vector<32x32xf32>
    %78 = vector.broadcast %58 : vector<1x32xf32> to vector<32x32xf32>
    %79 = arith.mulf %77, %78 : vector<32x32xf32>
    %80 = vector.broadcast %59 : vector<1x32xf32> to vector<32x32xf32>
    %81 = arith.addf %79, %80 : vector<32x32xf32>
    %c0_37 = arith.constant 0 : index
    %c0_38 = arith.constant 0 : index
    %82 = vector.load %arg11[%c0_37, %c0_38] : memref<32x32xf32, #tpu.memory_space<vmem>>, vector<32x32xf32>
    %cst_39 = arith.constant dense<0.000000e+00> : vector<16x32xf32>
    %83 = tpu.matmul %32, %82, %cst_39 {dimension_numbers = #tpu.dot_dimension_numbers<[1], [0], [0], [1], [0, 0, 1, 1], [], []>} : vector<16x32xf32>, vector<32x32xf32>, vector<16x32xf32> -> vector<16x32xf32>
    %c0_40 = arith.constant 0 : index
    %c0_41 = arith.constant 0 : index
    %84 = vector.load %arg12[%c0_40, %c0_41] : memref<1x32xf32, #tpu.memory_space<vmem>>, vector<1x32xf32>
    %85 = vector.broadcast %84 : vector<1x32xf32> to vector<16x32xf32>
    %86 = arith.addf %83, %85 : vector<16x32xf32>
    %c0_42 = arith.constant 0 : index
    %c0_43 = arith.constant 0 : index
    %87 = vector.load %arg13[%c0_42, %c0_43] : memref<32x32xf32, #tpu.memory_space<vmem>>, vector<32x32xf32>
    %cst_44 = arith.constant dense<0.000000e+00> : vector<32x32xf32>
    %88 = tpu.matmul %57, %87, %cst_44 {dimension_numbers = #tpu.dot_dimension_numbers<[1], [0], [0], [1], [0, 0, 1, 1], [], []>} : vector<32x32xf32>, vector<32x32xf32>, vector<32x32xf32> -> vector<32x32xf32>
    %c0_45 = arith.constant 0 : index
    %c0_46 = arith.constant 0 : index
    %89 = vector.load %arg14[%c0_45, %c0_46] : memref<1x32xf32, #tpu.memory_space<vmem>>, vector<1x32xf32>
    %90 = vector.broadcast %89 : vector<1x32xf32> to vector<32x32xf32>
    %91 = arith.addf %88, %90 : vector<32x32xf32>
    %c0_47 = arith.constant 0 : index
    %c0_48 = arith.constant 0 : index
    %92 = vector.load %arg15[%c0_47, %c0_48] : memref<32x32xf32, #tpu.memory_space<vmem>>, vector<32x32xf32>
    %cst_49 = arith.constant dense<0.000000e+00> : vector<32x32xf32>
    %93 = tpu.matmul %81, %92, %cst_49 {dimension_numbers = #tpu.dot_dimension_numbers<[1], [0], [0], [1], [0, 0, 1, 1], [], []>} : vector<32x32xf32>, vector<32x32xf32>, vector<32x32xf32> -> vector<32x32xf32>
    %c0_50 = arith.constant 0 : index
    %c0_51 = arith.constant 0 : index
    %94 = vector.load %arg16[%c0_50, %c0_51] : memref<1x32xf32, #tpu.memory_space<vmem>>, vector<1x32xf32>
    %95 = vector.broadcast %94 : vector<1x32xf32> to vector<32x32xf32>
    %96 = arith.addf %93, %95 : vector<32x32xf32>
    %97 = vector.extract_strided_slice %86 {offsets = [0, 0], sizes = [16, 8], strides = [1, 1]} : vector<16x32xf32> to vector<16x8xf32>
    %98 = vector.shape_cast %97 : vector<16x8xf32> to vector<2x8x8xf32>
    %99 = vector.extract_strided_slice %86 {offsets = [0, 8], sizes = [16, 8], strides = [1, 1]} : vector<16x32xf32> to vector<16x8xf32>
    %100 = vector.shape_cast %99 : vector<16x8xf32> to vector<2x8x8xf32>
    %101 = vector.extract_strided_slice %86 {offsets = [0, 16], sizes = [16, 8], strides = [1, 1]} : vector<16x32xf32> to vector<16x8xf32>
    %102 = vector.shape_cast %101 : vector<16x8xf32> to vector<2x8x8xf32>
    %103 = vector.extract_strided_slice %86 {offsets = [0, 24], sizes = [16, 8], strides = [1, 1]} : vector<16x32xf32> to vector<16x8xf32>
    %104 = vector.shape_cast %103 : vector<16x8xf32> to vector<2x8x8xf32>
    %105 = tpu.concatenate %98, %100, %102, %104 in 0 : vector<2x8x8xf32>, vector<2x8x8xf32>, vector<2x8x8xf32>, vector<2x8x8xf32> -> vector<8x8x8xf32>
    %106 = vector.extract_strided_slice %91 {offsets = [0, 0], sizes = [32, 8], strides = [1, 1]} : vector<32x32xf32> to vector<32x8xf32>
    %107 = vector.shape_cast %106 : vector<32x8xf32> to vector<2x16x8xf32>
    %108 = vector.extract_strided_slice %91 {offsets = [0, 8], sizes = [32, 8], strides = [1, 1]} : vector<32x32xf32> to vector<32x8xf32>
    %109 = vector.shape_cast %108 : vector<32x8xf32> to vector<2x16x8xf32>
    %110 = vector.extract_strided_slice %91 {offsets = [0, 16], sizes = [32, 8], strides = [1, 1]} : vector<32x32xf32> to vector<32x8xf32>
    %111 = vector.shape_cast %110 : vector<32x8xf32> to vector<2x16x8xf32>
    %112 = vector.extract_strided_slice %91 {offsets = [0, 24], sizes = [32, 8], strides = [1, 1]} : vector<32x32xf32> to vector<32x8xf32>
    %113 = vector.shape_cast %112 : vector<32x8xf32> to vector<2x16x8xf32>
    %114 = tpu.concatenate %107, %109, %111, %113 in 0 : vector<2x16x8xf32>, vector<2x16x8xf32>, vector<2x16x8xf32>, vector<2x16x8xf32> -> vector<8x16x8xf32>
    %115 = vector.extract_strided_slice %96 {offsets = [0, 0], sizes = [32, 8], strides = [1, 1]} : vector<32x32xf32> to vector<32x8xf32>
    %116 = vector.shape_cast %115 : vector<32x8xf32> to vector<2x16x8xf32>
    %117 = vector.extract_strided_slice %96 {offsets = [0, 8], sizes = [32, 8], strides = [1, 1]} : vector<32x32xf32> to vector<32x8xf32>
    %118 = vector.shape_cast %117 : vector<32x8xf32> to vector<2x16x8xf32>
    %119 = vector.extract_strided_slice %96 {offsets = [0, 16], sizes = [32, 8], strides = [1, 1]} : vector<32x32xf32> to vector<32x8xf32>
    %120 = vector.shape_cast %119 : vector<32x8xf32> to vector<2x16x8xf32>
    %121 = vector.extract_strided_slice %96 {offsets = [0, 24], sizes = [32, 8], strides = [1, 1]} : vector<32x32xf32> to vector<32x8xf32>
    %122 = vector.shape_cast %121 : vector<32x8xf32> to vector<2x16x8xf32>
    %123 = tpu.concatenate %116, %118, %120, %122 in 0 : vector<2x16x8xf32>, vector<2x16x8xf32>, vector<2x16x8xf32>, vector<2x16x8xf32> -> vector<8x16x8xf32>
    "tpu.trace_start"() <{level = 10 : i32, message = "zqd,zkd->zqk"}> : () -> ()
    %cst_52 = arith.constant dense<0.000000e+00> : vector<8x8x16xf32>
    %124 = tpu.matmul %105, %114, %cst_52 {dimension_numbers = #tpu.dot_dimension_numbers<[2], [2], [1], [1], [0, 0, 0, 1, 1, 1], [0], [0]>} : vector<8x8x8xf32>, vector<8x16x8xf32>, vector<8x8x16xf32> -> vector<8x8x16xf32>
    "tpu.trace_stop"() : () -> ()
    %cst_53 = arith.constant dense<0xFF800000> : vector<8x8xf32>
    %125 = vector.multi_reduction <maximumf>, %124, %cst_53 [2] : vector<8x8x16xf32> to vector<8x8xf32>
    %126 = vector.shape_cast %125 : vector<8x8xf32> to vector<8x8x1xf32>
    %127 = vector.broadcast %126 : vector<8x8x1xf32> to vector<8x8x16xf32>
    %128 = arith.subf %124, %127 : vector<8x8x16xf32>
    %129 = math.exp %128 : vector<8x8x16xf32>
    %cst_54 = arith.constant dense<0.000000e+00> : vector<8x8xf32>
    %130 = vector.multi_reduction <add>, %129, %cst_54 [2] : vector<8x8x16xf32> to vector<8x8xf32>
    %131 = vector.shape_cast %130 : vector<8x8xf32> to vector<8x8x1xf32>
    %132 = tpu.reciprocal %131 {approx = true} : vector<8x8x1xf32> -> vector<8x8x1xf32>
    %133 = vector.broadcast %132 : vector<8x8x1xf32> to vector<8x8x16xf32>
    %134 = arith.mulf %129, %133 : vector<8x8x16xf32>
    "tpu.trace_start"() <{level = 10 : i32, message = "zqk,zkd->zqd"}> : () -> ()
    %cst_55 = arith.constant dense<0.000000e+00> : vector<8x8x8xf32>
    %135 = tpu.matmul %134, %123, %cst_55 {dimension_numbers = #tpu.dot_dimension_numbers<[2], [1], [1], [2], [0, 0, 0, 1, 1, 2], [0], [0]>} : vector<8x8x16xf32>, vector<8x16x8xf32>, vector<8x8x8xf32> -> vector<8x8x8xf32>
    "tpu.trace_stop"() : () -> ()
    %136 = vector.shape_cast %135 : vector<8x8x8xf32> to vector<4x2x8x8xf32>
    %137 = vector.extract_strided_slice %136 {offsets = [0, 0, 0, 0], sizes = [1, 2, 8, 8], strides = [1, 1, 1, 1]} : vector<4x2x8x8xf32> to vector<1x2x8x8xf32>
    %138 = vector.shape_cast %137 : vector<1x2x8x8xf32> to vector<2x8x8xf32>
    %c0_56 = arith.constant 0 : index
    %c0_57 = arith.constant 0 : index
    %c0_58 = arith.constant 0 : index
    %139 = vector.load %arg20[%c0_56, %c0_57, %c0_58] : memref<2x8x32xf32, #tpu.memory_space<vmem>>, vector<2x8x8xf32>
    tpu.vector_store %arg20[%c0_56, %c0_57, %c0_58], %138 {strides = array<i32>} : memref<2x8x32xf32, #tpu.memory_space<vmem>>, vector<2x8x8xf32>,
    %140 = vector.extract_strided_slice %136 {offsets = [1, 0, 0, 0], sizes = [1, 2, 8, 8], strides = [1, 1, 1, 1]} : vector<4x2x8x8xf32> to vector<1x2x8x8xf32>
    %141 = vector.shape_cast %140 : vector<1x2x8x8xf32> to vector<2x8x8xf32>
    %c0_59 = arith.constant 0 : index
    %c0_60 = arith.constant 0 : index
    %c8 = arith.constant 8 : index
    %142 = vector.load %arg20[%c0_59, %c0_60, %c8] : memref<2x8x32xf32, #tpu.memory_space<vmem>>, vector<2x8x8xf32>
    tpu.vector_store %arg20[%c0_59, %c0_60, %c8], %141 {strides = array<i32>} : memref<2x8x32xf32, #tpu.memory_space<vmem>>, vector<2x8x8xf32>,
    %143 = vector.extract_strided_slice %136 {offsets = [2, 0, 0, 0], sizes = [1, 2, 8, 8], strides = [1, 1, 1, 1]} : vector<4x2x8x8xf32> to vector<1x2x8x8xf32>
    %144 = vector.shape_cast %143 : vector<1x2x8x8xf32> to vector<2x8x8xf32>
    %c0_61 = arith.constant 0 : index
    %c0_62 = arith.constant 0 : index
    %c16 = arith.constant 16 : index
    %145 = vector.load %arg20[%c0_61, %c0_62, %c16] : memref<2x8x32xf32, #tpu.memory_space<vmem>>, vector<2x8x8xf32>
    tpu.vector_store %arg20[%c0_61, %c0_62, %c16], %144 {strides = array<i32>} : memref<2x8x32xf32, #tpu.memory_space<vmem>>, vector<2x8x8xf32>,
    %146 = vector.extract_strided_slice %136 {offsets = [3, 0, 0, 0], sizes = [1, 2, 8, 8], strides = [1, 1, 1, 1]} : vector<4x2x8x8xf32> to vector<1x2x8x8xf32>
    %147 = vector.shape_cast %146 : vector<1x2x8x8xf32> to vector<2x8x8xf32>
    %c0_63 = arith.constant 0 : index
    %c0_64 = arith.constant 0 : index
    %c24 = arith.constant 24 : index
    %148 = vector.load %arg20[%c0_63, %c0_64, %c24] : memref<2x8x32xf32, #tpu.memory_space<vmem>>, vector<2x8x8xf32>
    tpu.vector_store %arg20[%c0_63, %c0_64, %c24], %147 {strides = array<i32>} : memref<2x8x32xf32, #tpu.memory_space<vmem>>, vector<2x8x8xf32>,
    %c0_65 = arith.constant 0 : index
    %c0_66 = arith.constant 0 : index
    %c0_67 = arith.constant 0 : index
    %149 = vector.load %arg20[%c0_65, %c0_66, %c0_67] : memref<2x8x32xf32, #tpu.memory_space<vmem>>, vector<2x8x32xf32>
    %150 = vector.shape_cast %149 : vector<2x8x32xf32> to vector<16x32xf32>
    %c0_68 = arith.constant 0 : index
    %c0_69 = arith.constant 0 : index
    %151 = vector.load %arg17[%c0_68, %c0_69] : memref<32x32xf32, #tpu.memory_space<vmem>>, vector<32x32xf32>
    %cst_70 = arith.constant dense<0.000000e+00> : vector<16x32xf32>
    %152 = tpu.matmul %150, %151, %cst_70 {dimension_numbers = #tpu.dot_dimension_numbers<[1], [0], [0], [1], [0, 0, 1, 1], [], []>} : vector<16x32xf32>, vector<32x32xf32>, vector<16x32xf32> -> vector<16x32xf32>
    %c0_71 = arith.constant 0 : index
    %c0_72 = arith.constant 0 : index
    %153 = vector.load %arg18[%c0_71, %c0_72] : memref<1x32xf32, #tpu.memory_space<vmem>>, vector<1x32xf32>
    %154 = vector.broadcast %153 : vector<1x32xf32> to vector<16x32xf32>
    %155 = arith.addf %152, %154 : vector<16x32xf32>
    %156 = vector.shape_cast %155 : vector<16x32xf32> to vector<2x8x32xf32>
    %c0_73 = arith.constant 0 : index
    %c0_74 = arith.constant 0 : index
    %c0_75 = arith.constant 0 : index
    %157 = vector.load %arg19[%c0_73, %c0_74, %c0_75] : memref<2x8x32xf32, #tpu.memory_space<vmem>>, vector<2x8x32xf32>
    tpu.vector_store %arg19[%c0_73, %c0_74, %c0_75], %156 {strides = array<i32>} : memref<2x8x32xf32, #tpu.memory_space<vmem>>, vector<2x8x32xf32>,
    return
  }
  func.func @transform_0(%arg0: i32) -> (i32, i32, i32) {
    %c0_i32 = arith.constant 0 : i32
    %c0_i32_0 = arith.constant 0 : i32
    %c0_i32_1 = arith.constant 0 : i32
    return %arg0, %c0_i32, %c0_i32_0 : i32, i32, i32
  }
  func.func @transform_1(%arg0: i32) -> (i32, i32, i32) {
    %c0_i32 = arith.constant 0 : i32
    %c0_i32_0 = arith.constant 0 : i32
    %c0_i32_1 = arith.constant 0 : i32
    return %arg0, %c0_i32, %c0_i32_0 : i32, i32, i32
  }
  func.func @transform_2(%arg0: i32) -> (i32, i32, i32) {
    %c0_i32 = arith.constant 0 : i32
    %c0_i32_0 = arith.constant 0 : i32
    %c0_i32_1 = arith.constant 0 : i32
    return %arg0, %c0_i32, %c0_i32_0 : i32, i32, i32
  }
  func.func @transform_3(%arg0: i32) -> (i32, i32, i32) {
    %c0_i32 = arith.constant 0 : i32
    %c0_i32_0 = arith.constant 0 : i32
    %c0_i32_1 = arith.constant 0 : i32
    return %arg0, %c0_i32, %c0_i32_0 : i32, i32, i32
  }
  func.func @transform_4(%arg0: i32) -> (i32, i32) {
    %c0_i32 = arith.constant 0 : i32
    %c0_i32_0 = arith.constant 0 : i32
    %c0_i32_1 = arith.constant 0 : i32
    return %c0_i32, %c0_i32_0 : i32, i32
  }
  func.func @transform_5(%arg0: i32) -> (i32, i32) {
    %c0_i32 = arith.constant 0 : i32
    %c0_i32_0 = arith.constant 0 : i32
    %c0_i32_1 = arith.constant 0 : i32
    return %c0_i32, %c0_i32_0 : i32, i32
  }
  func.func @transform_6(%arg0: i32) -> (i32, i32) {
    %c0_i32 = arith.constant 0 : i32
    %c0_i32_0 = arith.constant 0 : i32
    %c0_i32_1 = arith.constant 0 : i32
    return %c0_i32, %c0_i32_0 : i32, i32
  }
  func.func @transform_7(%arg0: i32) -> (i32, i32) {
    %c0_i32 = arith.constant 0 : i32
    %c0_i32_0 = arith.constant 0 : i32
    %c0_i32_1 = arith.constant 0 : i32
    return %c0_i32, %c0_i32_0 : i32, i32
  }
  func.func @transform_8(%arg0: i32) -> (i32, i32) {
    %c0_i32 = arith.constant 0 : i32
    %c0_i32_0 = arith.constant 0 : i32
    %c0_i32_1 = arith.constant 0 : i32
    return %c0_i32, %c0_i32_0 : i32, i32
  }
  func.func @transform_9(%arg0: i32) -> (i32, i32) {
    %c0_i32 = arith.constant 0 : i32
    %c0_i32_0 = arith.constant 0 : i32
    %c0_i32_1 = arith.constant 0 : i32
    return %c0_i32, %c0_i32_0 : i32, i32
  }
  func.func @transform_10(%arg0: i32) -> (i32, i32) {
    %c0_i32 = arith.constant 0 : i32
    %c0_i32_0 = arith.constant 0 : i32
    %c0_i32_1 = arith.constant 0 : i32
    return %c0_i32, %c0_i32_0 : i32, i32
  }
  func.func @transform_11(%arg0: i32) -> (i32, i32) {
    %c0_i32 = arith.constant 0 : i32
    %c0_i32_0 = arith.constant 0 : i32
    %c0_i32_1 = arith.constant 0 : i32
    return %c0_i32, %c0_i32_0 : i32, i32
  }
  func.func @transform_12(%arg0: i32) -> (i32, i32) {
    %c0_i32 = arith.constant 0 : i32
    %c0_i32_0 = arith.constant 0 : i32
    %c0_i32_1 = arith.constant 0 : i32
    return %c0_i32, %c0_i32_0 : i32, i32
  }
  func.func @transform_13(%arg0: i32) -> (i32, i32) {
    %c0_i32 = arith.constant 0 : i32
    %c0_i32_0 = arith.constant 0 : i32
    %c0_i32_1 = arith.constant 0 : i32
    return %c0_i32, %c0_i32_0 : i32, i32
  }
  func.func @transform_14(%arg0: i32) -> (i32, i32) {
    %c0_i32 = arith.constant 0 : i32
    %c0_i32_0 = arith.constant 0 : i32
    %c0_i32_1 = arith.constant 0 : i32
    return %c0_i32, %c0_i32_0 : i32, i32
  }
  func.func @transform_15(%arg0: i32) -> (i32, i32) {
    %c0_i32 = arith.constant 0 : i32
    %c0_i32_0 = arith.constant 0 : i32
    %c0_i32_1 = arith.constant 0 : i32
    return %c0_i32, %c0_i32_0 : i32, i32
  }
  func.func @transform_16(%arg0: i32) -> (i32, i32) {
    %c0_i32 = arith.constant 0 : i32
    %c0_i32_0 = arith.constant 0 : i32
    %c0_i32_1 = arith.constant 0 : i32
    return %c0_i32, %c0_i32_0 : i32, i32
  }
  func.func @transform_17(%arg0: i32) -> (i32, i32) {
    %c0_i32 = arith.constant 0 : i32
    %c0_i32_0 = arith.constant 0 : i32
    %c0_i32_1 = arith.constant 0 : i32
    return %c0_i32, %c0_i32_0 : i32, i32
  }
  func.func @transform_18(%arg0: i32) -> (i32, i32, i32) {
    %c0_i32 = arith.constant 0 : i32
    %c0_i32_0 = arith.constant 0 : i32
    %c0_i32_1 = arith.constant 0 : i32
    return %arg0, %c0_i32, %c0_i32_0 : i32, i32, i32
  }
}

</mosaic_0001>

<llo_original>
// kernel: tpu_custom_call.1
$region0: #{tpu_custom_call.1}
  #allocation0 [shape = 'u32[]', space=smem, size = 0x4, offset = 0x4, fixed_abs, tag = 'smem constant byte address 0x4 - core index']
  #allocation1 [shape = 'u32[144,128]{1,0:T(1,128)}', space=vmem, size = 0x12000, scoped, tag = 'internal scratch']
  #allocation2 [shape = 'f32[2,8,32]{2,1,0:T(8,128)}', space=vmem, size = 0x2000, scoped, tag = 'scratch operand']
  %s0 = inlined_call_operand.hbm [shape: f32[2,8,32], index: 0, kind: input, shape index: {}]
  %s1 = inlined_call_operand.hbm [shape: f32[2,16,32], index: 1, kind: input, shape index: {}]
  %s2 = inlined_call_operand.hbm [shape: f32[2,8,32], index: 2, kind: input, shape index: {}]
  %s3 = inlined_call_operand.hbm [shape: f32[2,16,32], index: 3, kind: input, shape index: {}]
  %s4 = inlined_call_operand.vmem [shape: f32[1,32], index: 4, kind: input, shape index: {}]
  %s5 = inlined_call_operand.vmem [shape: f32[1,32], index: 5, kind: input, shape index: {}]
  %s6 = inlined_call_operand.vmem [shape: f32[1,32], index: 6, kind: input, shape index: {}]
  %s7 = inlined_call_operand.vmem [shape: f32[1,32], index: 7, kind: input, shape index: {}]
  %s8 = inlined_call_operand.vmem [shape: f32[1,32], index: 8, kind: input, shape index: {}]
  %s9 = inlined_call_operand.hbm [shape: f32[1,32], index: 9, kind: input, shape index: {}]
  %s10 = inlined_call_operand.vmem [shape: f32[32,32], index: 10, kind: input, shape index: {}]
  %s11 = inlined_call_operand.vmem [shape: f32[1,32], index: 11, kind: input, shape index: {}]
  %s12 = inlined_call_operand.hbm [shape: f32[32,32], index: 12, kind: input, shape index: {}]
  %s13 = inlined_call_operand.vmem [shape: f32[1,32], index: 13, kind: input, shape index: {}]
  %s14 = inlined_call_operand.hbm [shape: f32[32,32], index: 14, kind: input, shape index: {}]
  %s15 = inlined_call_operand.vmem [shape: f32[1,32], index: 15, kind: input, shape index: {}]
  %s16 = inlined_call_operand.hbm [shape: f32[32,32], index: 16, kind: input, shape index: {}]
  %s17 = inlined_call_operand.vmem [shape: f32[1,32], index: 17, kind: input, shape index: {}]
  %s18 = inlined_call_operand.hbm [shape: f32[2,8,32], index: 18, kind: output, shape index: {}]
  %s19 = sld [smem:[#allocation0]]
  $region114: #{tpu_custom_call.1} parent=0
    _
  %s21 = ssub.s32 1, %s19
  %s22 = scalar_select 0, %s21, %s19
  $region1: #{tpu_custom_call.1} parent=0
    #allocation3 [shape = 'u8[8192]{0}', space=vmem, size = 0x2000, scoped, tag = 'input window, operand 0, single buffered']
    #allocation4 [shape = 's32[1]{0}', space=sflag, size = 0x4, scoped, tag = 'scoped memory for tpu_custom_call.1']
    #allocation5 [shape = 's32[1]{0}', space=sflag, size = 0x4, scoped, tag = 'scoped memory for tpu_custom_call.1']
    #allocation6 [shape = 'u8[16384]{0}', space=vmem, size = 0x4000, scoped, tag = 'input window, operand 1, single buffered']
    #allocation7 [shape = 's32[1]{0}', space=sflag, size = 0x4, scoped, tag = 'scoped memory for tpu_custom_call.1']
    #allocation8 [shape = 'u8[8192]{0}', space=vmem, size = 0x2000, scoped, tag = 'input window, operand 2, single buffered']
    #allocation9 [shape = 'u8[16384]{0}', space=vmem, size = 0x4000, scoped, tag = 'input window, operand 3, single buffered']
    #allocation10 [shape = 's32[1]{0}', space=sflag, size = 0x4, scoped, tag = 'scoped memory for tpu_custom_call.1']
    #allocation11 [shape = 'u8[512]{0}', space=vmem, size = 0x400, scoped, tag = 'input window, operand 9, single buffered']
    #allocation12 [shape = 'u8[16384]{0}', space=vmem, size = 0x4000, scoped, tag = 'input window, operand 12, single buffered']
    #allocation13 [shape = 's32[1]{0}', space=sflag, size = 0x4, scoped, tag = 'scoped memory for tpu_custom_call.1']
    #allocation14 [shape = 'u8[16384]{0}', space=vmem, size = 0x4000, scoped, tag = 'input window, operand 14, single buffered']
    #allocation15 [shape = 'u8[16384]{0}', space=vmem, size = 0x4000, scoped, tag = 'input window, operand 16, single buffered']
    #allocation16 [shape = 's32[1]{0}', space=sflag, size = 0x4, scoped, tag = 'scoped memory for tpu_custom_call.1']
    #allocation17 [shape = 'u8[8192]{0}', space=vmem, size = 0x2000, scoped, tag = 'output window, operand 0, single buffered']
    %23 = vsyncpa [#allocation4], 0
    %24 = vsyncpa [#allocation7], 0
    %25 = vsyncpa [#allocation10], 0
    %26 = vsyncpa [#allocation13], 0
    %27 = vsyncpa [#allocation16], 0
    %28 = vsyncpa [#allocation5], 0
    // Predicated region
    $region2: #{tpu_custom_call.1} parent=1 // pred_check
      _
    $region3: #{tpu_custom_call.1} parent=1 // pred_check_branch
      %30 = sbr.rel (0) target = $region5
    $region4: #{tpu_custom_call.1} parent=1 // pred_region
      %s32 = ssub.s32 256, 256
      %33 = vsyncadd [#allocation4], %s32
      %s34 = sshll.u32 [#allocation3], 4
      %s35 = int_to_ptr.vmem [resolvable:$true] %s34
      %40 = dma.hbm_to_vmem [thread:$0]  %s0, 256, %s35, [#allocation4], 128, 128, 8
    $region5: #{tpu_custom_call.1} parent=1 // pred_fallthru
      _
    // Predicated region
    $region6: #{tpu_custom_call.1} parent=1 // pred_check
      _
    $region7: #{tpu_custom_call.1} parent=1 // pred_check_branch
      %42 = sbr.rel (0) target = $region9
    $region8: #{tpu_custom_call.1} parent=1 // pred_region
      %s44 = ssub.s32 512, 512
      %45 = vsyncadd [#allocation7], %s44
      %s46 = sshll.u32 [#allocation6], 4
      %s47 = int_to_ptr.vmem [resolvable:$true] %s46
      %52 = dma.hbm_to_vmem [thread:$0]  %s1, 512, %s47, [#allocation7], 128, 128, 8
    $region9: #{tpu_custom_call.1} parent=1 // pred_fallthru
      _
    // Predicated region
    $region10: #{tpu_custom_call.1} parent=1 // pred_check
      _
    $region11: #{tpu_custom_call.1} parent=1 // pred_check_branch
      %54 = sbr.rel (0) target = $region13
    $region12: #{tpu_custom_call.1} parent=1 // pred_region
      %s56 = ssub.s32 256, 256
      %57 = vsyncadd [#allocation7], %s56
      %s58 = sshll.u32 [#allocation8], 4
      %s59 = int_to_ptr.vmem [resolvable:$true] %s58
      %64 = dma.hbm_to_vmem [thread:$0]  %s2, 256, %s59, [#allocation7], 128, 128, 8
    $region13: #{tpu_custom_call.1} parent=1 // pred_fallthru
      _
    // Predicated region
    $region14: #{tpu_custom_call.1} parent=1 // pred_check
      _
    $region15: #{tpu_custom_call.1} parent=1 // pred_check_branch
      %66 = sbr.rel (0) target = $region17
    $region16: #{tpu_custom_call.1} parent=1 // pred_region
      %s68 = ssub.s32 512, 512
      %69 = vsyncadd [#allocation10], %s68
      %s70 = sshll.u32 [#allocation9], 4
      %s71 = int_to_ptr.vmem [resolvable:$true] %s70
      %76 = dma.hbm_to_vmem [thread:$0]  %s3, 512, %s71, [#allocation10], 128, 128, 8
    $region17: #{tpu_custom_call.1} parent=1 // pred_fallthru
      _
    // Predicated region
    $region18: #{tpu_custom_call.1} parent=1 // pred_check
      _
    $region19: #{tpu_custom_call.1} parent=1 // pred_check_branch
      %78 = sbr.rel (0) target = $region21
    $region20: #{tpu_custom_call.1} parent=1 // pred_region
      _
    $region21: #{tpu_custom_call.1} parent=1 // pred_fallthru
      _
    // Predicated region
    $region22: #{tpu_custom_call.1} parent=1 // pred_check
      _
    $region23: #{tpu_custom_call.1} parent=1 // pred_check_branch
      %80 = sbr.rel (0) target = $region25
    $region24: #{tpu_custom_call.1} parent=1 // pred_region
      _
    $region25: #{tpu_custom_call.1} parent=1 // pred_fallthru
      _
    // Predicated region
    $region26: #{tpu_custom_call.1} parent=1 // pred_check
      _
    $region27: #{tpu_custom_call.1} parent=1 // pred_check_branch
      %82 = sbr.rel (0) target = $region29
    $region28: #{tpu_custom_call.1} parent=1 // pred_region
      _
    $region29: #{tpu_custom_call.1} parent=1 // pred_fallthru
      _
    // Predicated region
    $region30: #{tpu_custom_call.1} parent=1 // pred_check
      _
    $region31: #{tpu_custom_call.1} parent=1 // pred_check_branch
      %84 = sbr.rel (0) target = $region33
    $region32: #{tpu_custom_call.1} parent=1 // pred_region
      _
    $region33: #{tpu_custom_call.1} parent=1 // pred_fallthru
      _
    // Predicated region
    $region34: #{tpu_custom_call.1} parent=1 // pred_check
      _
    $region35: #{tpu_custom_call.1} parent=1 // pred_check_branch
      %86 = sbr.rel (0) target = $region37
    $region36: #{tpu_custom_call.1} parent=1 // pred_region
      _
    $region37: #{tpu_custom_call.1} parent=1 // pred_fallthru
      _
    // Predicated region
    $region38: #{tpu_custom_call.1} parent=1 // pred_check
      _
    $region39: #{tpu_custom_call.1} parent=1 // pred_check_branch
      %88 = sbr.rel (0) target = $region41
    $region40: #{tpu_custom_call.1} parent=1 // pred_region
      %s90 = ssub.s32 16, 16
      %91 = vsyncadd [#allocation10], %s90
      %s93 = sshll.u32 [#allocation11], 4
      %s94 = int_to_ptr.vmem [resolvable:$true] %s93
      %96 = dma.hbm_to_vmem [thread:$0]  %s9, 16, %s94, [#allocation10]
    $region41: #{tpu_custom_call.1} parent=1 // pred_fallthru
      _
    // Predicated region
    $region42: #{tpu_custom_call.1} parent=1 // pred_check
      _
    $region43: #{tpu_custom_call.1} parent=1 // pred_check_branch
      %98 = sbr.rel (0) target = $region45
    $region44: #{tpu_custom_call.1} parent=1 // pred_region
      _
    $region45: #{tpu_custom_call.1} parent=1 // pred_fallthru
      _
    // Predicated region
    $region46: #{tpu_custom_call.1} parent=1 // pred_check
      _
    $region47: #{tpu_custom_call.1} parent=1 // pred_check_branch
      %100 = sbr.rel (0) target = $region49
    $region48: #{tpu_custom_call.1} parent=1 // pred_region
      _
    $region49: #{tpu_custom_call.1} parent=1 // pred_fallthru
      _
    // Predicated region
    $region50: #{tpu_custom_call.1} parent=1 // pred_check
      _
    $region51: #{tpu_custom_call.1} parent=1 // pred_check_branch
      %102 = sbr.rel (0) target = $region53
    $region52: #{tpu_custom_call.1} parent=1 // pred_region
      %s104 = ssub.s32 512, 512
      %105 = vsyncadd [#allocation13], %s104
      %s106 = sshll.u32 [#allocation12], 4
      %s107 = int_to_ptr.vmem [resolvable:$true] %s106
      %112 = dma.hbm_to_vmem [thread:$0]  %s12, 512, %s107, [#allocation13], 128, 128, 8
    $region53: #{tpu_custom_call.1} parent=1 // pred_fallthru
      _
    // Predicated region
    $region54: #{tpu_custom_call.1} parent=1 // pred_check
      _
    $region55: #{tpu_custom_call.1} parent=1 // pred_check_branch
      %114 = sbr.rel (0) target = $region57
    $region56: #{tpu_custom_call.1} parent=1 // pred_region
      _
    $region57: #{tpu_custom_call.1} parent=1 // pred_fallthru
      _
    // Predicated region
    $region58: #{tpu_custom_call.1} parent=1 // pred_check
      _
    $region59: #{tpu_custom_call.1} parent=1 // pred_check_branch
      %116 = sbr.rel (0) target = $region61
    $region60: #{tpu_custom_call.1} parent=1 // pred_region
      %s118 = ssub.s32 512, 512
      %119 = vsyncadd [#allocation13], %s118
      %s120 = sshll.u32 [#allocation14], 4
      %s121 = int_to_ptr.vmem [resolvable:$true] %s120
      %126 = dma.hbm_to_vmem [thread:$0]  %s14, 512, %s121, [#allocation13], 128, 128, 8
    $region61: #{tpu_custom_call.1} parent=1 // pred_fallthru
      _
    // Predicated region
    $region62: #{tpu_custom_call.1} parent=1 // pred_check
      _
    $region63: #{tpu_custom_call.1} parent=1 // pred_check_branch
      %128 = sbr.rel (0) target = $region65
    $region64: #{tpu_custom_call.1} parent=1 // pred_region
      _
    $region65: #{tpu_custom_call.1} parent=1 // pred_fallthru
      _
    // Predicated region
    $region66: #{tpu_custom_call.1} parent=1 // pred_check
      _
    $region67: #{tpu_custom_call.1} parent=1 // pred_check_branch
      %130 = sbr.rel (0) target = $region69
    $region68: #{tpu_custom_call.1} parent=1 // pred_region
      %s132 = ssub.s32 512, 512
      %133 = vsyncadd [#allocation16], %s132
      %s134 = sshll.u32 [#allocation15], 4
      %s135 = int_to_ptr.vmem [resolvable:$true] %s134
      %140 = dma.hbm_to_vmem [thread:$0]  %s16, 512, %s135, [#allocation16], 128, 128, 8
    $region69: #{tpu_custom_call.1} parent=1 // pred_fallthru
      _
    // Predicated region
    $region70: #{tpu_custom_call.1} parent=1 // pred_check
      _
    $region71: #{tpu_custom_call.1} parent=1 // pred_check_branch
      %142 = sbr.rel (0) target = $region73
    $region72: #{tpu_custom_call.1} parent=1 // pred_region
      _
    $region73: #{tpu_custom_call.1} parent=1 // pred_fallthru
      _
    // Predicated region
    $region74: #{tpu_custom_call.1} parent=1 // pred_check
      _
    $region75: #{tpu_custom_call.1} parent=1 // pred_check_branch
      %144 = sbr.rel (0) target = $region77
    $region76: #{tpu_custom_call.1} parent=1 // pred_region
      %145 = dma.done [#allocation4], 256
    $region77: #{tpu_custom_call.1} parent=1 // pred_fallthru
      _
    // Predicated region
    $region78: #{tpu_custom_call.1} parent=1 // pred_check
      _
    $region79: #{tpu_custom_call.1} parent=1 // pred_check_branch
      %147 = sbr.rel (0) target = $region81
    $region80: #{tpu_custom_call.1} parent=1 // pred_region
      %148 = dma.done [#allocation7], 512
    $region81: #{tpu_custom_call.1} parent=1 // pred_fallthru
      _
    // Predicated region
    $region82: #{tpu_custom_call.1} parent=1 // pred_check
      _
    $region83: #{tpu_custom_call.1} parent=1 // pred_check_branch
      %150 = sbr.rel (0) target = $region85
    $region84: #{tpu_custom_call.1} parent=1 // pred_region
      %151 = dma.done [#allocation7], 256
    $region85: #{tpu_custom_call.1} parent=1 // pred_fallthru
      _
    // Predicated region
    $region86: #{tpu_custom_call.1} parent=1 // pred_check
      _
    $region87: #{tpu_custom_call.1} parent=1 // pred_check_branch
      %153 = sbr.rel (0) target = $region89
    $region88: #{tpu_custom_call.1} parent=1 // pred_region
      %154 = dma.done [#allocation10], 512
    $region89: #{tpu_custom_call.1} parent=1 // pred_fallthru
      _
    // Predicated region
    $region90: #{tpu_custom_call.1} parent=1 // pred_check
      _
    $region91: #{tpu_custom_call.1} parent=1 // pred_check_branch
      %156 = sbr.rel (0) target = $region93
    $region92: #{tpu_custom_call.1} parent=1 // pred_region
      %157 = dma.done [#allocation10], 16
    $region93: #{tpu_custom_call.1} parent=1 // pred_fallthru
      _
    // Predicated region
    $region94: #{tpu_custom_call.1} parent=1 // pred_check
      _
    $region95: #{tpu_custom_call.1} parent=1 // pred_check_branch
      %159 = sbr.rel (0) target = $region97
    $region96: #{tpu_custom_call.1} parent=1 // pred_region
      %160 = dma.done [#allocation13], 512
    $region97: #{tpu_custom_call.1} parent=1 // pred_fallthru
      _
    // Predicated region
    $region98: #{tpu_custom_call.1} parent=1 // pred_check
      _
    $region99: #{tpu_custom_call.1} parent=1 // pred_check_branch
      %162 = sbr.rel (0) target = $region101
    $region100: #{tpu_custom_call.1} parent=1 // pred_region
      %163 = dma.done [#allocation13], 512
    $region101: #{tpu_custom_call.1} parent=1 // pred_fallthru
      _
    // Predicated region
    $region102: #{tpu_custom_call.1} parent=1 // pred_check
      _
    $region103: #{tpu_custom_call.1} parent=1 // pred_check_branch
      %165 = sbr.rel (0) target = $region105
    $region104: #{tpu_custom_call.1} parent=1 // pred_region
      %166 = dma.done [#allocation16], 512
    $region105: #{tpu_custom_call.1} parent=1 // pred_fallthru
      _
    %v167 = vld [vmem:[#allocation3] sm:$0xff]
    %v168 = vld [vmem:[#allocation3 + $0x8] sm:$0xff]
    %v169 = vld [vmem:[#allocation8] sm:$0xff]
    %v170 = vld [vmem:[#allocation8 + $0x8] sm:$0xff]
    %v171 = vld [vmem:[#allocation6] sm:$0xff]
    %v172 = vld [vmem:[#allocation6 + $0x8] sm:$0xff]
    %v173 = vld [vmem:[#allocation6 + $0x10] sm:$0xff]
    %v174 = vld [vmem:[#allocation6 + $0x18] sm:$0xff]
    %v175 = vld [vmem:[#allocation9] sm:$0xff]
    %v176 = vld [vmem:[#allocation9 + $0x8] sm:$0xff]
    %v177 = vld [vmem:[#allocation9 + $0x10] sm:$0xff]
    %v178 = vld [vmem:[#allocation9 + $0x18] sm:$0xff]
    %v179 = vadd.f32 %v167, %v169
    %v180 = vadd.f32 %v168, %v170
    %v181 = vld [vmem:[%s4] sm:$0x1]
    %v182 = vld [vmem:[%s5] sm:$0x1]
    %vm183 = vcmask 261120
    %v184 = vsel %vm183, %v179, 0.0
    %185 = vadd.xlane.f32.xlu0 %v184
    %v186 = vpop.xlane.xlu0 %185
    %v187 = vsel %vm183, %v180, 0.0
    %188 = vadd.xlane.f32.xlu0 %v187
    %v189 = vpop.xlane.xlu0 %188
    %v190 = vrcp.pop 32.0
    %v191 = vmul.f32 %v186, %v190
    %v192 = vmul.f32 %v189, %v190
    %v193 = vsub.f32 %v179, %v191
    %v194 = vsub.f32 %v180, %v192
    %v195 = vmul.f32 %v193, %v193
    %v196 = vmul.f32 %v194, %v194
    %v197 = vsel %vm183, %v195, 0.0
    %198 = vadd.xlane.f32.xlu0 %v197
    %v199 = vpop.xlane.xlu0 %198
    %v200 = vsel %vm183, %v196, 0.0
    %201 = vadd.xlane.f32.xlu0 %v200
    %v202 = vpop.xlane.xlu0 %201
    %v203 = vmul.f32 %v199, %v190
    %v204 = vmul.f32 %v202, %v190
    %v205 = vadd.f32 %v203, 1e-06
    %v206 = vadd.f32 %v204, 1e-06
    %v207 = vrsqrt.pop %v205
    %v208 = vrsqrt.pop %v206
    %v209 = vmul.f32 %v193, %v207
    %v210 = vmul.f32 %v194, %v208
    %v212 = vlaneseq
    %v213 = vshrl.u32 %v212, 7
    %v214 = vsub.s32 0, %v213
    %v215 = vrot.slane %v181, %v214
    %v217 = vmul.f32 %v209, %v215
    %v218 = vmul.f32 %v210, %v215
    %v220 = vlaneseq
    %v221 = vshrl.u32 %v220, 7
    %v222 = vsub.s32 0, %v221
    %v223 = vrot.slane %v182, %v222
    %v225 = vadd.f32 %v217, %v223
    %v226 = vadd.f32 %v218, %v223
    %v227 = vadd.f32 %v171, %v175
    %v228 = vadd.f32 %v172, %v176
    %v229 = vadd.f32 %v173, %v177
    %v230 = vadd.f32 %v174, %v178
    %v231 = vld [vmem:[%s6] sm:$0x1]
    %v232 = vld [vmem:[%s7] sm:$0x1]
    %v233 = vsel %vm183, %v227, 0.0
    %234 = vadd.xlane.f32.xlu0 %v233
    %v235 = vpop.xlane.xlu0 %234
    %v236 = vsel %vm183, %v228, 0.0
    %237 = vadd.xlane.f32.xlu0 %v236
    %v238 = vpop.xlane.xlu0 %237
    %v239 = vsel %vm183, %v229, 0.0
    %240 = vadd.xlane.f32.xlu0 %v239
    %v241 = vpop.xlane.xlu0 %240
    %v242 = vsel %vm183, %v230, 0.0
    %243 = vadd.xlane.f32.xlu0 %v242
    %v244 = vpop.xlane.xlu0 %243
    %v245 = vmul.f32 %v235, %v190
    %v246 = vmul.f32 %v238, %v190
    %v247 = vmul.f32 %v241, %v190
    %v248 = vmul.f32 %v244, %v190
    %v249 = vsub.f32 %v227, %v245
    %v250 = vsub.f32 %v228, %v246
    %v251 = vsub.f32 %v229, %v247
    %v252 = vsub.f32 %v230, %v248
    %v253 = vmul.f32 %v249, %v249
    %v254 = vmul.f32 %v250, %v250
    %v255 = vmul.f32 %v251, %v251
    %v256 = vmul.f32 %v252, %v252
    %v257 = vsel %vm183, %v253, 0.0
    %258 = vadd.xlane.f32.xlu0 %v257
    %v259 = vpop.xlane.xlu0 %258
    %v260 = vsel %vm183, %v254, 0.0
    %261 = vadd.xlane.f32.xlu0 %v260
    %v262 = vpop.xlane.xlu0 %261
    %v263 = vsel %vm183, %v255, 0.0
    %264 = vadd.xlane.f32.xlu0 %v263
    %v265 = vpop.xlane.xlu0 %264
    %v266 = vsel %vm183, %v256, 0.0
    %267 = vadd.xlane.f32.xlu0 %v266
    %v268 = vpop.xlane.xlu0 %267
    %v269 = vmul.f32 %v259, %v190
    %v270 = vmul.f32 %v262, %v190
    %v271 = vmul.f32 %v265, %v190
    %v272 = vmul.f32 %v268, %v190
    %v273 = vadd.f32 %v269, 1e-06
    %v274 = vadd.f32 %v270, 1e-06
    %v275 = vadd.f32 %v271, 1e-06
    %v276 = vadd.f32 %v272, 1e-06
    %v277 = vrsqrt.pop %v273
    %v278 = vrsqrt.pop %v274
    %v279 = vrsqrt.pop %v275
    %v280 = vrsqrt.pop %v276
    %v281 = vmul.f32 %v249, %v277
    %v282 = vmul.f32 %v250, %v278
    %v283 = vmul.f32 %v251, %v279
    %v284 = vmul.f32 %v252, %v280
    %v286 = vlaneseq
    %v287 = vshrl.u32 %v286, 7
    %v288 = vsub.s32 0, %v287
    %v289 = vrot.slane %v231, %v288
    %v291 = vmul.f32 %v281, %v289
    %v292 = vmul.f32 %v282, %v289
    %v293 = vmul.f32 %v283, %v289
    %v294 = vmul.f32 %v284, %v289
    %v296 = vlaneseq
    %v297 = vshrl.u32 %v296, 7
    %v298 = vsub.s32 0, %v297
    %v299 = vrot.slane %v232, %v298
    %v301 = vadd.f32 %v291, %v299
    %v302 = vadd.f32 %v292, %v299
    %v303 = vadd.f32 %v293, %v299
    %v304 = vadd.f32 %v294, %v299
    %v305 = vld [vmem:[%s8] sm:$0x1]
    %v306 = vld [vmem:[#allocation11] sm:$0x1]
    %v307 = vsel %vm183, %v171, 0.0
    %308 = vadd.xlane.f32.xlu0 %v307
    %v309 = vpop.xlane.xlu0 %308
    %v310 = vsel %vm183, %v172, 0.0
    %311 = vadd.xlane.f32.xlu0 %v310
    %v312 = vpop.xlane.xlu0 %311
    %v313 = vsel %vm183, %v173, 0.0
    %314 = vadd.xlane.f32.xlu0 %v313
    %v315 = vpop.xlane.xlu0 %314
    %v316 = vsel %vm183, %v174, 0.0
    %317 = vadd.xlane.f32.xlu0 %v316
    %v318 = vpop.xlane.xlu0 %317
    %v319 = vmul.f32 %v309, %v190
    %v320 = vmul.f32 %v312, %v190
    %v321 = vmul.f32 %v315, %v190
    %v322 = vmul.f32 %v318, %v190
    %v323 = vsub.f32 %v171, %v319
    %v324 = vsub.f32 %v172, %v320
    %v325 = vsub.f32 %v173, %v321
    %v326 = vsub.f32 %v174, %v322
    %v327 = vmul.f32 %v323, %v323
    %v328 = vmul.f32 %v324, %v324
    %v329 = vmul.f32 %v325, %v325
    %v330 = vmul.f32 %v326, %v326
    %v331 = vsel %vm183, %v327, 0.0
    %332 = vadd.xlane.f32.xlu0 %v331
    %v333 = vpop.xlane.xlu0 %332
    %v334 = vsel %vm183, %v328, 0.0
    %335 = vadd.xlane.f32.xlu0 %v334
    %v336 = vpop.xlane.xlu0 %335
    %v337 = vsel %vm183, %v329, 0.0
    %338 = vadd.xlane.f32.xlu0 %v337
    %v339 = vpop.xlane.xlu0 %338
    %v340 = vsel %vm183, %v330, 0.0
    %341 = vadd.xlane.f32.xlu0 %v340
    %v342 = vpop.xlane.xlu0 %341
    %v343 = vmul.f32 %v333, %v190
    %v344 = vmul.f32 %v336, %v190
    %v345 = vmul.f32 %v339, %v190
    %v346 = vmul.f32 %v342, %v190
    %v347 = vadd.f32 %v343, 1e-06
    %v348 = vadd.f32 %v344, 1e-06
    %v349 = vadd.f32 %v345, 1e-06
    %v350 = vadd.f32 %v346, 1e-06
    %v351 = vrsqrt.pop %v347
    %v352 = vrsqrt.pop %v348
    %v353 = vrsqrt.pop %v349
    %v354 = vrsqrt.pop %v350
    %v355 = vmul.f32 %v323, %v351
    %v356 = vmul.f32 %v324, %v352
    %v357 = vmul.f32 %v325, %v353
    %v358 = vmul.f32 %v326, %v354
    %v360 = vlaneseq
    %v361 = vshrl.u32 %v360, 7
    %v362 = vsub.s32 0, %v361
    %v363 = vrot.slane %v305, %v362
    %v365 = vmul.f32 %v355, %v363
    %v366 = vmul.f32 %v356, %v363
    %v367 = vmul.f32 %v357, %v363
    %v368 = vmul.f32 %v358, %v363
    %v370 = vlaneseq
    %v371 = vshrl.u32 %v370, 7
    %v372 = vsub.s32 0, %v371
    %v373 = vrot.slane %v306, %v372
    %v375 = vadd.f32 %v365, %v373
    %v376 = vadd.f32 %v366, %v373
    %v377 = vadd.f32 %v367, %v373
    %v378 = vadd.f32 %v368, %v373
    %v379 = vld [vmem:[%s10] sm:$0xff]
    %v380 = vld [vmem:[%s10 + $0x8] sm:$0xff]
    %v381 = vld [vmem:[%s10 + $0x10] sm:$0xff]
    %v382 = vld [vmem:[%s10 + $0x18] sm:$0xff]
    %v383 = vld [vmem:[%s11] sm:$0x1]
    %v385 = vlaneseq
    %v386 = vshrl.u32 %v385, 7
    %v387 = vsub.s32 0, %v386
    %v388 = vrot.slane %v383, %v387
    %v391 = vsel %vm183, %v225, 0
    %v394 = vsel %vm183, %v226, 0
    %396 = vmatprep.subr.mxu0 0.0
    %397 = vmatpush1.msra.mxu0 %v379
    %398 = vmatprep.subr.mxu0 0.0
    %399 = vmatpush1.msra.mxu0 %v380
    %400 = vmatprep.subr.mxu0 0.0
    %401 = vmatpush1.msra.mxu0 %v381
    %402 = vmatprep.subr.mxu0 0.0
    %403 = vmatpush1.msra.mxu0 %v382
    %404 = vmatprep.subr.mxu0 0.0
    %405 = vmatpush1.msra.mxu0 0.0
    %406 = vmatprep.subr.mxu0 0.0
    %407 = vmatpush1.msra.mxu0 0.0
    %408 = vmatprep.subr.mxu0 0.0
    %409 = vmatpush1.msra.mxu0 0.0
    %410 = vmatprep.subr.mxu0 0.0
    %411 = vmatpush1.msra.mxu0 0.0
    %412 = vmatprep.subr.mxu0 0.0
    %413 = vmatpush1.msra.mxu0 0.0
    %414 = vmatprep.subr.mxu0 0.0
    %415 = vmatpush1.msra.mxu0 0.0
    %416 = vmatprep.subr.mxu0 0.0
    %417 = vmatpush1.msra.mxu0 0.0
    %418 = vmatprep.subr.mxu0 0.0
    %419 = vmatpush1.msra.mxu0 0.0
    %420 = vmatprep.subr.mxu0 0.0
    %421 = vmatpush1.msra.mxu0 0.0
    %422 = vmatprep.subr.mxu0 0.0
    %423 = vmatpush1.msra.mxu0 0.0
    %424 = vmatprep.subr.mxu0 0.0
    %425 = vmatpush1.msra.mxu0 0.0
    %426 = vmatprep.subr.mxu0 0.0
    %427 = vmatpush1.msra.mxu0 0.0
    %428 = vmatprep.subr.mxu0 0.0
    %429 = vmatpush1.msra.mxu0 0.0
    %430 = vmatprep.subr.mxu0 0.0
    %431 = vmatpush1.msra.mxu0 0.0
    %432 = vmatprep.subr.mxu0 0.0
    %433 = vmatpush1.msra.mxu0 0.0
    %434 = vmatprep.subr.mxu0 0.0
    %435 = vmatpush1.msra.mxu0 0.0
    %436 = vmatprep.subr.mxu0 0.0
    %437 = vmatpush1.msra.mxu0 0.0
    %438 = vmatprep.subr.mxu0 0.0
    %439 = vmatpush1.msra.mxu0 0.0
    %440 = vmatprep.subr.mxu0 0.0
    %441 = vmatpush1.msra.mxu0 0.0
    %442 = vmatprep.subr.mxu0 0.0
    %443 = vmatpush1.msra.mxu0 0.0
    %444 = vmatprep.subr.mxu0 0.0
    %445 = vmatpush1.msra.mxu0 0.0
    %446 = vmatprep.subr.mxu0 0.0
    %447 = vmatpush1.msra.mxu0 0.0
    %448 = vmatprep.subr.mxu0 0.0
    %449 = vmatpush1.msra.mxu0 0.0
    %450 = vmatprep.subr.mxu0 0.0
    %451 = vmatpush1.msra.mxu0 0.0
    %452 = vmatprep.subr.mxu0 0.0
    %453 = vmatpush1.msra.mxu0 0.0
    %454 = vmatprep.subr.mxu0 0.0
    %455 = vmatpush1.msra.mxu0 0.0
    %456 = vmatprep.subr.mxu0 0.0
    %457 = vmatpush1.msra.mxu0 0.0
    %458 = vmatprep.subr.mxu0 0.0
    %459 = vmatpush1.msra.mxu0 0.0
    %460 = vmatprep.mubr.f32.mxu0 0.0
    %461 = vmatmul.mubr.f32.gmra.mrb[0].mxu0 %v391
    %v462 = vpop.f32.mrb[0].mxu0
    %v463 = vadd.f32 %v388, %v462
    %v464 = vpop.f32.mrb[0].mxu0
    %465 = vmatprep.mubr.f32.mxu0 0.0
    %466 = vmatmul.mubr.f32.gmra.mrb[0].mxu0 %v394
    %v467 = vpop.f32.mrb[0].mxu0
    %v468 = vadd.f32 %v388, %v467
    %v469 = vpop.f32.mrb[0].mxu0
    %470 = vdwg.mxu0
    %v471 = vld [vmem:[#allocation12] sm:$0xff]
    %v472 = vld [vmem:[#allocation12 + $0x8] sm:$0xff]
    %v473 = vld [vmem:[#allocation12 + $0x10] sm:$0xff]
    %v474 = vld [vmem:[#allocation12 + $0x18] sm:$0xff]
    %v475 = vld [vmem:[%s13] sm:$0x1]
    %v477 = vlaneseq
    %v478 = vshrl.u32 %v477, 7
    %v479 = vsub.s32 0, %v478
    %v480 = vrot.slane %v475, %v479
    %v483 = vsel %vm183, %v301, 0
    %v486 = vsel %vm183, %v302, 0
    %v489 = vsel %vm183, %v303, 0
    %v492 = vsel %vm183, %v304, 0
    %494 = vmatprep.subr.mxu0 0.0
    %495 = vmatpush1.msra.mxu0 %v471
    %496 = vmatprep.subr.mxu0 0.0
    %497 = vmatpush1.msra.mxu0 %v472
    %498 = vmatprep.subr.mxu0 0.0
    %499 = vmatpush1.msra.mxu0 %v473
    %500 = vmatprep.subr.mxu0 0.0
    %501 = vmatpush1.msra.mxu0 %v474
    %502 = vmatprep.subr.mxu0 0.0
    %503 = vmatpush1.msra.mxu0 0.0
    %504 = vmatprep.subr.mxu0 0.0
    %505 = vmatpush1.msra.mxu0 0.0
    %506 = vmatprep.subr.mxu0 0.0
    %507 = vmatpush1.msra.mxu0 0.0
    %508 = vmatprep.subr.mxu0 0.0
    %509 = vmatpush1.msra.mxu0 0.0
    %510 = vmatprep.subr.mxu0 0.0
    %511 = vmatpush1.msra.mxu0 0.0
    %512 = vmatprep.subr.mxu0 0.0
    %513 = vmatpush1.msra.mxu0 0.0
    %514 = vmatprep.subr.mxu0 0.0
    %515 = vmatpush1.msra.mxu0 0.0
    %516 = vmatprep.subr.mxu0 0.0
    %517 = vmatpush1.msra.mxu0 0.0
    %518 = vmatprep.subr.mxu0 0.0
    %519 = vmatpush1.msra.mxu0 0.0
    %520 = vmatprep.subr.mxu0 0.0
    %521 = vmatpush1.msra.mxu0 0.0
    %522 = vmatprep.subr.mxu0 0.0
    %523 = vmatpush1.msra.mxu0 0.0
    %524 = vmatprep.subr.mxu0 0.0
    %525 = vmatpush1.msra.mxu0 0.0
    %526 = vmatprep.subr.mxu0 0.0
    %527 = vmatpush1.msra.mxu0 0.0
    %528 = vmatprep.subr.mxu0 0.0
    %529 = vmatpush1.msra.mxu0 0.0
    %530 = vmatprep.subr.mxu0 0.0
    %531 = vmatpush1.msra.mxu0 0.0
    %532 = vmatprep.subr.mxu0 0.0
    %533 = vmatpush1.msra.mxu0 0.0
    %534 = vmatprep.subr.mxu0 0.0
    %535 = vmatpush1.msra.mxu0 0.0
    %536 = vmatprep.subr.mxu0 0.0
    %537 = vmatpush1.msra.mxu0 0.0
    %538 = vmatprep.subr.mxu0 0.0
    %539 = vmatpush1.msra.mxu0 0.0
    %540 = vmatprep.subr.mxu0 0.0
    %541 = vmatpush1.msra.mxu0 0.0
    %542 = vmatprep.subr.mxu0 0.0
    %543 = vmatpush1.msra.mxu0 0.0
    %544 = vmatprep.subr.mxu0 0.0
    %545 = vmatpush1.msra.mxu0 0.0
    %546 = vmatprep.subr.mxu0 0.0
    %547 = vmatpush1.msra.mxu0 0.0
    %548 = vmatprep.subr.mxu0 0.0
    %549 = vmatpush1.msra.mxu0 0.0
    %550 = vmatprep.subr.mxu0 0.0
    %551 = vmatpush1.msra.mxu0 0.0
    %552 = vmatprep.subr.mxu0 0.0
    %553 = vmatpush1.msra.mxu0 0.0
    %554 = vmatprep.subr.mxu0 0.0
    %555 = vmatpush1.msra.mxu0 0.0
    %556 = vmatprep.subr.mxu0 0.0
    %557 = vmatpush1.msra.mxu0 0.0
    %558 = vmatprep.mubr.f32.mxu0 0.0
    %559 = vmatmul.mubr.f32.gmra.mrb[0].mxu0 %v483
    %v560 = vpop.f32.mrb[0].mxu0
    %v561 = vadd.f32 %v480, %v560
    %v562 = vpop.f32.mrb[0].mxu0
    %563 = vmatprep.mubr.f32.mxu0 0.0
    %564 = vmatmul.mubr.f32.gmra.mrb[0].mxu0 %v486
    %v565 = vpop.f32.mrb[0].mxu0
    %v566 = vadd.f32 %v480, %v565
    %v567 = vpop.f32.mrb[0].mxu0
    %568 = vmatprep.mubr.f32.mxu0 0.0
    %569 = vmatmul.mubr.f32.gmra.mrb[0].mxu0 %v489
    %v570 = vpop.f32.mrb[0].mxu0
    %v571 = vadd.f32 %v480, %v570
    %v572 = vpop.f32.mrb[0].mxu0
    %573 = vmatprep.mubr.f32.mxu0 0.0
    %574 = vmatmul.mubr.f32.gmra.mrb[0].mxu0 %v492
    %v575 = vpop.f32.mrb[0].mxu0
    %v576 = vadd.f32 %v480, %v575
    %v577 = vpop.f32.mrb[0].mxu0
    %578 = vdwg.mxu0
    %v579 = vld [vmem:[#allocation14] sm:$0xff]
    %v580 = vld [vmem:[#allocation14 + $0x8] sm:$0xff]
    %v581 = vld [vmem:[#allocation14 + $0x10] sm:$0xff]
    %v582 = vld [vmem:[#allocation14 + $0x18] sm:$0xff]
    %v583 = vld [vmem:[%s15] sm:$0x1]
    %v585 = vlaneseq
    %v586 = vshrl.u32 %v585, 7
    %v587 = vsub.s32 0, %v586
    %v588 = vrot.slane %v583, %v587
    %v591 = vsel %vm183, %v375, 0
    %v594 = vsel %vm183, %v376, 0
    %v597 = vsel %vm183, %v377, 0
    %v600 = vsel %vm183, %v378, 0
    %602 = vmatprep.subr.mxu0 0.0
    %603 = vmatpush1.msra.mxu0 %v579
    %604 = vmatprep.subr.mxu0 0.0
    %605 = vmatpush1.msra.mxu0 %v580
    %606 = vmatprep.subr.mxu0 0.0
    %607 = vmatpush1.msra.mxu0 %v581
    %608 = vmatprep.subr.mxu0 0.0
    %609 = vmatpush1.msra.mxu0 %v582
    %610 = vmatprep.subr.mxu0 0.0
    %611 = vmatpush1.msra.mxu0 0.0
    %612 = vmatprep.subr.mxu0 0.0
    %613 = vmatpush1.msra.mxu0 0.0
    %614 = vmatprep.subr.mxu0 0.0
    %615 = vmatpush1.msra.mxu0 0.0
    %616 = vmatprep.subr.mxu0 0.0
    %617 = vmatpush1.msra.mxu0 0.0
    %618 = vmatprep.subr.mxu0 0.0
    %619 = vmatpush1.msra.mxu0 0.0
    %620 = vmatprep.subr.mxu0 0.0
    %621 = vmatpush1.msra.mxu0 0.0
    %622 = vmatprep.subr.mxu0 0.0
    %623 = vmatpush1.msra.mxu0 0.0
    %624 = vmatprep.subr.mxu0 0.0
    %625 = vmatpush1.msra.mxu0 0.0
    %626 = vmatprep.subr.mxu0 0.0
    %627 = vmatpush1.msra.mxu0 0.0
    %628 = vmatprep.subr.mxu0 0.0
    %629 = vmatpush1.msra.mxu0 0.0
    %630 = vmatprep.subr.mxu0 0.0
    %631 = vmatpush1.msra.mxu0 0.0
    %632 = vmatprep.subr.mxu0 0.0
    %633 = vmatpush1.msra.mxu0 0.0
    %634 = vmatprep.subr.mxu0 0.0
    %635 = vmatpush1.msra.mxu0 0.0
    %636 = vmatprep.subr.mxu0 0.0
    %637 = vmatpush1.msra.mxu0 0.0
    %638 = vmatprep.subr.mxu0 0.0
    %639 = vmatpush1.msra.mxu0 0.0
    %640 = vmatprep.subr.mxu0 0.0
    %641 = vmatpush1.msra.mxu0 0.0
    %642 = vmatprep.subr.mxu0 0.0
    %643 = vmatpush1.msra.mxu0 0.0
    %644 = vmatprep.subr.mxu0 0.0
    %645 = vmatpush1.msra.mxu0 0.0
    %646 = vmatprep.subr.mxu0 0.0
    %647 = vmatpush1.msra.mxu0 0.0
    %648 = vmatprep.subr.mxu0 0.0
    %649 = vmatpush1.msra.mxu0 0.0
    %650 = vmatprep.subr.mxu0 0.0
    %651 = vmatpush1.msra.mxu0 0.0
    %652 = vmatprep.subr.mxu0 0.0
    %653 = vmatpush1.msra.mxu0 0.0
    %654 = vmatprep.subr.mxu0 0.0
    %655 = vmatpush1.msra.mxu0 0.0
    %656 = vmatprep.subr.mxu0 0.0
    %657 = vmatpush1.msra.mxu0 0.0
    %658 = vmatprep.subr.mxu0 0.0
    %659 = vmatpush1.msra.mxu0 0.0
    %660 = vmatprep.subr.mxu0 0.0
    %661 = vmatpush1.msra.mxu0 0.0
    %662 = vmatprep.subr.mxu0 0.0
    %663 = vmatpush1.msra.mxu0 0.0
    %664 = vmatprep.subr.mxu0 0.0
    %665 = vmatpush1.msra.mxu0 0.0
    %666 = vmatprep.mubr.f32.mxu0 0.0
    %667 = vmatmul.mubr.f32.gmra.mrb[0].mxu0 %v591
    %v668 = vpop.f32.mrb[0].mxu0
    %v669 = vadd.f32 %v588, %v668
    %v670 = vpop.f32.mrb[0].mxu0
    %671 = vmatprep.mubr.f32.mxu0 0.0
    %672 = vmatmul.mubr.f32.gmra.mrb[0].mxu0 %v594
    %v673 = vpop.f32.mrb[0].mxu0
    %v674 = vadd.f32 %v588, %v673
    %v675 = vpop.f32.mrb[0].mxu0
    %676 = vmatprep.mubr.f32.mxu0 0.0
    %677 = vmatmul.mubr.f32.gmra.mrb[0].mxu0 %v597
    %v678 = vpop.f32.mrb[0].mxu0
    %v679 = vadd.f32 %v588, %v678
    %v680 = vpop.f32.mrb[0].mxu0
    %681 = vmatprep.mubr.f32.mxu0 0.0
    %682 = vmatmul.mubr.f32.gmra.mrb[0].mxu0 %v600
    %v683 = vpop.f32.mrb[0].mxu0
    %v684 = vadd.f32 %v588, %v683
    %v685 = vpop.f32.mrb[0].mxu0
    %686 = vdwg.mxu0
    %689 = vrot.lane.b32.xlu0 %v463, 120
    %v690 = vpop.permute.xlu0 %689
    %691 = vrot.lane.b32.xlu0 %v468, 120
    %v692 = vpop.permute.xlu0 %691
    %693 = vrot.lane.b32.xlu0 %v463, 112
    %v694 = vpop.permute.xlu0 %693
    %695 = vrot.lane.b32.xlu0 %v468, 112
    %v696 = vpop.permute.xlu0 %695
    %697 = vrot.lane.b32.xlu0 %v463, 104
    %v698 = vpop.permute.xlu0 %697
    %699 = vrot.lane.b32.xlu0 %v468, 104
    %v700 = vpop.permute.xlu0 %699
    %705 = vrot.lane.b32.xlu0 %v561, 120
    %v706 = vpop.permute.xlu0 %705
    %707 = vrot.lane.b32.xlu0 %v566, 120
    %v708 = vpop.permute.xlu0 %707
    %709 = vrot.lane.b32.xlu0 %v571, 120
    %v710 = vpop.permute.xlu0 %709
    %711 = vrot.lane.b32.xlu0 %v576, 120
    %v712 = vpop.permute.xlu0 %711
    %713 = vrot.lane.b32.xlu0 %v561, 112
    %v714 = vpop.permute.xlu0 %713
    %715 = vrot.lane.b32.xlu0 %v566, 112
    %v716 = vpop.permute.xlu0 %715
    %717 = vrot.lane.b32.xlu0 %v571, 112
    %v718 = vpop.permute.xlu0 %717
    %719 = vrot.lane.b32.xlu0 %v576, 112
    %v720 = vpop.permute.xlu0 %719
    %721 = vrot.lane.b32.xlu0 %v561, 104
    %v722 = vpop.permute.xlu0 %721
    %723 = vrot.lane.b32.xlu0 %v566, 104
    %v724 = vpop.permute.xlu0 %723
    %725 = vrot.lane.b32.xlu0 %v571, 104
    %v726 = vpop.permute.xlu0 %725
    %727 = vrot.lane.b32.xlu0 %v576, 104
    %v728 = vpop.permute.xlu0 %727
    %733 = vrot.lane.b32.xlu0 %v669, 120
    %v734 = vpop.permute.xlu0 %733
    %735 = vrot.lane.b32.xlu0 %v674, 120
    %v736 = vpop.permute.xlu0 %735
    %737 = vrot.lane.b32.xlu0 %v679, 120
    %v738 = vpop.permute.xlu0 %737
    %739 = vrot.lane.b32.xlu0 %v684, 120
    %v740 = vpop.permute.xlu0 %739
    %745 = vrot.lane.b32.xlu0 %v669, 112
    %v746 = vpop.permute.xlu0 %745
    %747 = vrot.lane.b32.xlu0 %v674, 112
    %v748 = vpop.permute.xlu0 %747
    %749 = vrot.lane.b32.xlu0 %v679, 112
    %v750 = vpop.permute.xlu0 %749
    %751 = vrot.lane.b32.xlu0 %v684, 112
    %v752 = vpop.permute.xlu0 %751
    %757 = vrot.lane.b32.xlu0 %v669, 104
    %v758 = vpop.permute.xlu0 %757
    %759 = vrot.lane.b32.xlu0 %v674, 104
    %v760 = vpop.permute.xlu0 %759
    %761 = vrot.lane.b32.xlu0 %v679, 104
    %v762 = vpop.permute.xlu0 %761
    %763 = vrot.lane.b32.xlu0 %v684, 104
    %v764 = vpop.permute.xlu0 %763
    %vm769 = vcmask 64512
    %v770 = vsel %vm769, %v463, 0
    %v772 = vsel %vm769, %v561, 0
    %v774 = vsel %vm769, %v566, 0
    %776 = vmatprep.subr.mxu0 0.0
    %777 = vmatpush1.xpose.msra.mxu0 %v772
    %778 = vmatprep.subr.mxu0 0.0
    %779 = vmatpush1.xpose.msra.mxu0 %v774
    %780 = vmatprep.subr.mxu0 0.0
    %781 = vmatpush1.xpose.msra.mxu0 0.0
    %782 = vmatprep.subr.mxu0 0.0
    %783 = vmatpush1.xpose.msra.mxu0 0.0
    %784 = vmatprep.subr.mxu0 0.0
    %785 = vmatpush1.xpose.msra.mxu0 0.0
    %786 = vmatprep.subr.mxu0 0.0
    %787 = vmatpush1.xpose.msra.mxu0 0.0
    %788 = vmatprep.subr.mxu0 0.0
    %789 = vmatpush1.xpose.msra.mxu0 0.0
    %790 = vmatprep.subr.mxu0 0.0
    %791 = vmatpush1.xpose.msra.mxu0 0.0
    %792 = vmatprep.subr.mxu0 0.0
    %793 = vmatpush1.xpose.msra.mxu0 0.0
    %794 = vmatprep.subr.mxu0 0.0
    %795 = vmatpush1.xpose.msra.mxu0 0.0
    %796 = vmatprep.subr.mxu0 0.0
    %797 = vmatpush1.xpose.msra.mxu0 0.0
    %798 = vmatprep.subr.mxu0 0.0
    %799 = vmatpush1.xpose.msra.mxu0 0.0
    %800 = vmatprep.subr.mxu0 0.0
    %801 = vmatpush1.xpose.msra.mxu0 0.0
    %802 = vmatprep.subr.mxu0 0.0
    %803 = vmatpush1.xpose.msra.mxu0 0.0
    %804 = vmatprep.subr.mxu0 0.0
    %805 = vmatpush1.xpose.msra.mxu0 0.0
    %806 = vmatprep.subr.mxu0 0.0
    %807 = vmatpush1.xpose.msra.mxu0 0.0
    %808 = vmatprep.subr.mxu0 0.0
    %809 = vmatpush1.xpose.msra.mxu0 0.0
    %810 = vmatprep.subr.mxu0 0.0
    %811 = vmatpush1.xpose.msra.mxu0 0.0
    %812 = vmatprep.subr.mxu0 0.0
    %813 = vmatpush1.xpose.msra.mxu0 0.0
    %814 = vmatprep.subr.mxu0 0.0
    %815 = vmatpush1.xpose.msra.mxu0 0.0
    %816 = vmatprep.subr.mxu0 0.0
    %817 = vmatpush1.xpose.msra.mxu0 0.0
    %818 = vmatprep.subr.mxu0 0.0
    %819 = vmatpush1.xpose.msra.mxu0 0.0
    %820 = vmatprep.subr.mxu0 0.0
    %821 = vmatpush1.xpose.msra.mxu0 0.0
    %822 = vmatprep.subr.mxu0 0.0
    %823 = vmatpush1.xpose.msra.mxu0 0.0
    %824 = vmatprep.subr.mxu0 0.0
    %825 = vmatpush1.xpose.msra.mxu0 0.0
    %826 = vmatprep.subr.mxu0 0.0
    %827 = vmatpush1.xpose.msra.mxu0 0.0
    %828 = vmatprep.subr.mxu0 0.0
    %829 = vmatpush1.xpose.msra.mxu0 0.0
    %830 = vmatprep.subr.mxu0 0.0
    %831 = vmatpush1.xpose.msra.mxu0 0.0
    %832 = vmatprep.subr.mxu0 0.0
    %833 = vmatpush1.xpose.msra.mxu0 0.0
    %834 = vmatprep.subr.mxu0 0.0
    %835 = vmatpush1.xpose.msra.mxu0 0.0
    %836 = vmatprep.subr.mxu0 0.0
    %837 = vmatpush1.xpose.msra.mxu0 0.0
    %838 = vmatprep.subr.mxu0 0.0
    %839 = vmatpush1.xpose.msra.mxu0 0.0
    %840 = vmatprep.mubr.f32.mxu0 0.0
    %841 = vmatmul.mubr.f32.gmra.mrb[0].mxu0 %v770
    %v842 = vpop.f32.mrb[0].mxu0
    %v843 = vadd.f32 0.0, %v842
    %v844 = vpop.f32.mrb[0].mxu0
    %845 = vdwg.mxu0
    %v846 = vsel %vm769, %v468, 0
    %v848 = vsel %vm769, %v571, 0
    %v850 = vsel %vm769, %v576, 0
    %852 = vmatprep.subr.mxu0 0.0
    %853 = vmatpush1.xpose.msra.mxu0 %v848
    %854 = vmatprep.subr.mxu0 0.0
    %855 = vmatpush1.xpose.msra.mxu0 %v850
    %856 = vmatprep.subr.mxu0 0.0
    %857 = vmatpush1.xpose.msra.mxu0 0.0
    %858 = vmatprep.subr.mxu0 0.0
    %859 = vmatpush1.xpose.msra.mxu0 0.0
    %860 = vmatprep.subr.mxu0 0.0
    %861 = vmatpush1.xpose.msra.mxu0 0.0
    %862 = vmatprep.subr.mxu0 0.0
    %863 = vmatpush1.xpose.msra.mxu0 0.0
    %864 = vmatprep.subr.mxu0 0.0
    %865 = vmatpush1.xpose.msra.mxu0 0.0
    %866 = vmatprep.subr.mxu0 0.0
    %867 = vmatpush1.xpose.msra.mxu0 0.0
    %868 = vmatprep.subr.mxu0 0.0
    %869 = vmatpush1.xpose.msra.mxu0 0.0
    %870 = vmatprep.subr.mxu0 0.0
    %871 = vmatpush1.xpose.msra.mxu0 0.0
    %872 = vmatprep.subr.mxu0 0.0
    %873 = vmatpush1.xpose.msra.mxu0 0.0
    %874 = vmatprep.subr.mxu0 0.0
    %875 = vmatpush1.xpose.msra.mxu0 0.0
    %876 = vmatprep.subr.mxu0 0.0
    %877 = vmatpush1.xpose.msra.mxu0 0.0
    %878 = vmatprep.subr.mxu0 0.0
    %879 = vmatpush1.xpose.msra.mxu0 0.0
    %880 = vmatprep.subr.mxu0 0.0
    %881 = vmatpush1.xpose.msra.mxu0 0.0
    %882 = vmatprep.subr.mxu0 0.0
    %883 = vmatpush1.xpose.msra.mxu0 0.0
    %884 = vmatprep.subr.mxu0 0.0
    %885 = vmatpush1.xpose.msra.mxu0 0.0
    %886 = vmatprep.subr.mxu0 0.0
    %887 = vmatpush1.xpose.msra.mxu0 0.0
    %888 = vmatprep.subr.mxu0 0.0
    %889 = vmatpush1.xpose.msra.mxu0 0.0
    %890 = vmatprep.subr.mxu0 0.0
    %891 = vmatpush1.xpose.msra.mxu0 0.0
    %892 = vmatprep.subr.mxu0 0.0
    %893 = vmatpush1.xpose.msra.mxu0 0.0
    %894 = vmatprep.subr.mxu0 0.0
    %895 = vmatpush1.xpose.msra.mxu0 0.0
    %896 = vmatprep.subr.mxu0 0.0
    %897 = vmatpush1.xpose.msra.mxu0 0.0
    %898 = vmatprep.subr.mxu0 0.0
    %899 = vmatpush1.xpose.msra.mxu0 0.0
    %900 = vmatprep.subr.mxu0 0.0
    %901 = vmatpush1.xpose.msra.mxu0 0.0
    %902 = vmatprep.subr.mxu0 0.0
    %903 = vmatpush1.xpose.msra.mxu0 0.0
    %904 = vmatprep.subr.mxu0 0.0
    %905 = vmatpush1.xpose.msra.mxu0 0.0
    %906 = vmatprep.subr.mxu0 0.0
    %907 = vmatpush1.xpose.msra.mxu0 0.0
    %908 = vmatprep.subr.mxu0 0.0
    %909 = vmatpush1.xpose.msra.mxu0 0.0
    %910 = vmatprep.subr.mxu0 0.0
    %911 = vmatpush1.xpose.msra.mxu0 0.0
    %912 = vmatprep.subr.mxu0 0.0
    %913 = vmatpush1.xpose.msra.mxu0 0.0
    %914 = vmatprep.subr.mxu0 0.0
    %915 = vmatpush1.xpose.msra.mxu0 0.0
    %916 = vmatprep.mubr.f32.mxu0 0.0
    %917 = vmatmul.mubr.f32.gmra.mrb[0].mxu0 %v846
    %v918 = vpop.f32.mrb[0].mxu0
    %v919 = vadd.f32 0.0, %v918
    %v920 = vpop.f32.mrb[0].mxu0
    %921 = vdwg.mxu0
    %v922 = vsel %vm769, %v690, 0
    %v924 = vsel %vm769, %v706, 0
    %v926 = vsel %vm769, %v708, 0
    %928 = vmatprep.subr.mxu0 0.0
    %929 = vmatpush1.xpose.msra.mxu0 %v924
    %930 = vmatprep.subr.mxu0 0.0
    %931 = vmatpush1.xpose.msra.mxu0 %v926
    %932 = vmatprep.subr.mxu0 0.0
    %933 = vmatpush1.xpose.msra.mxu0 0.0
    %934 = vmatprep.subr.mxu0 0.0
    %935 = vmatpush1.xpose.msra.mxu0 0.0
    %936 = vmatprep.subr.mxu0 0.0
    %937 = vmatpush1.xpose.msra.mxu0 0.0
    %938 = vmatprep.subr.mxu0 0.0
    %939 = vmatpush1.xpose.msra.mxu0 0.0
    %940 = vmatprep.subr.mxu0 0.0
    %941 = vmatpush1.xpose.msra.mxu0 0.0
    %942 = vmatprep.subr.mxu0 0.0
    %943 = vmatpush1.xpose.msra.mxu0 0.0
    %944 = vmatprep.subr.mxu0 0.0
    %945 = vmatpush1.xpose.msra.mxu0 0.0
    %946 = vmatprep.subr.mxu0 0.0
    %947 = vmatpush1.xpose.msra.mxu0 0.0
    %948 = vmatprep.subr.mxu0 0.0
    %949 = vmatpush1.xpose.msra.mxu0 0.0
    %950 = vmatprep.subr.mxu0 0.0
    %951 = vmatpush1.xpose.msra.mxu0 0.0
    %952 = vmatprep.subr.mxu0 0.0
    %953 = vmatpush1.xpose.msra.mxu0 0.0
    %954 = vmatprep.subr.mxu0 0.0
    %955 = vmatpush1.xpose.msra.mxu0 0.0
    %956 = vmatprep.subr.mxu0 0.0
    %957 = vmatpush1.xpose.msra.mxu0 0.0
    %958 = vmatprep.subr.mxu0 0.0
    %959 = vmatpush1.xpose.msra.mxu0 0.0
    %960 = vmatprep.subr.mxu0 0.0
    %961 = vmatpush1.xpose.msra.mxu0 0.0
    %962 = vmatprep.subr.mxu0 0.0
    %963 = vmatpush1.xpose.msra.mxu0 0.0
    %964 = vmatprep.subr.mxu0 0.0
    %965 = vmatpush1.xpose.msra.mxu0 0.0
    %966 = vmatprep.subr.mxu0 0.0
    %967 = vmatpush1.xpose.msra.mxu0 0.0
    %968 = vmatprep.subr.mxu0 0.0
    %969 = vmatpush1.xpose.msra.mxu0 0.0
    %970 = vmatprep.subr.mxu0 0.0
    %971 = vmatpush1.xpose.msra.mxu0 0.0
    %972 = vmatprep.subr.mxu0 0.0
    %973 = vmatpush1.xpose.msra.mxu0 0.0
    %974 = vmatprep.subr.mxu0 0.0
    %975 = vmatpush1.xpose.msra.mxu0 0.0
    %976 = vmatprep.subr.mxu0 0.0
    %977 = vmatpush1.xpose.msra.mxu0 0.0
    %978 = vmatprep.subr.mxu0 0.0
    %979 = vmatpush1.xpose.msra.mxu0 0.0
    %980 = vmatprep.subr.mxu0 0.0
    %981 = vmatpush1.xpose.msra.mxu0 0.0
    %982 = vmatprep.subr.mxu0 0.0
    %983 = vmatpush1.xpose.msra.mxu0 0.0
    %984 = vmatprep.subr.mxu0 0.0
    %985 = vmatpush1.xpose.msra.mxu0 0.0
    %986 = vmatprep.subr.mxu0 0.0
    %987 = vmatpush1.xpose.msra.mxu0 0.0
    %988 = vmatprep.subr.mxu0 0.0
    %989 = vmatpush1.xpose.msra.mxu0 0.0
    %990 = vmatprep.subr.mxu0 0.0
    %991 = vmatpush1.xpose.msra.mxu0 0.0
    %992 = vmatprep.mubr.f32.mxu0 0.0
    %993 = vmatmul.mubr.f32.gmra.mrb[0].mxu0 %v922
    %v994 = vpop.f32.mrb[0].mxu0
    %v995 = vadd.f32 0.0, %v994
    %v996 = vpop.f32.mrb[0].mxu0
    %997 = vdwg.mxu0
    %v998 = vsel %vm769, %v692, 0
    %v1000 = vsel %vm769, %v710, 0
    %v1002 = vsel %vm769, %v712, 0
    %1004 = vmatprep.subr.mxu0 0.0
    %1005 = vmatpush1.xpose.msra.mxu0 %v1000
    %1006 = vmatprep.subr.mxu0 0.0
    %1007 = vmatpush1.xpose.msra.mxu0 %v1002
    %1008 = vmatprep.subr.mxu0 0.0
    %1009 = vmatpush1.xpose.msra.mxu0 0.0
    %1010 = vmatprep.subr.mxu0 0.0
    %1011 = vmatpush1.xpose.msra.mxu0 0.0
    %1012 = vmatprep.subr.mxu0 0.0
    %1013 = vmatpush1.xpose.msra.mxu0 0.0
    %1014 = vmatprep.subr.mxu0 0.0
    %1015 = vmatpush1.xpose.msra.mxu0 0.0
    %1016 = vmatprep.subr.mxu0 0.0
    %1017 = vmatpush1.xpose.msra.mxu0 0.0
    %1018 = vmatprep.subr.mxu0 0.0
    %1019 = vmatpush1.xpose.msra.mxu0 0.0
    %1020 = vmatprep.subr.mxu0 0.0
    %1021 = vmatpush1.xpose.msra.mxu0 0.0
    %1022 = vmatprep.subr.mxu0 0.0
    %1023 = vmatpush1.xpose.msra.mxu0 0.0
    %1024 = vmatprep.subr.mxu0 0.0
    %1025 = vmatpush1.xpose.msra.mxu0 0.0
    %1026 = vmatprep.subr.mxu0 0.0
    %1027 = vmatpush1.xpose.msra.mxu0 0.0
    %1028 = vmatprep.subr.mxu0 0.0
    %1029 = vmatpush1.xpose.msra.mxu0 0.0
    %1030 = vmatprep.subr.mxu0 0.0
    %1031 = vmatpush1.xpose.msra.mxu0 0.0
    %1032 = vmatprep.subr.mxu0 0.0
    %1033 = vmatpush1.xpose.msra.mxu0 0.0
    %1034 = vmatprep.subr.mxu0 0.0
    %1035 = vmatpush1.xpose.msra.mxu0 0.0
    %1036 = vmatprep.subr.mxu0 0.0
    %1037 = vmatpush1.xpose.msra.mxu0 0.0
    %1038 = vmatprep.subr.mxu0 0.0
    %1039 = vmatpush1.xpose.msra.mxu0 0.0
    %1040 = vmatprep.subr.mxu0 0.0
    %1041 = vmatpush1.xpose.msra.mxu0 0.0
    %1042 = vmatprep.subr.mxu0 0.0
    %1043 = vmatpush1.xpose.msra.mxu0 0.0
    %1044 = vmatprep.subr.mxu0 0.0
    %1045 = vmatpush1.xpose.msra.mxu0 0.0
    %1046 = vmatprep.subr.mxu0 0.0
    %1047 = vmatpush1.xpose.msra.mxu0 0.0
    %1048 = vmatprep.subr.mxu0 0.0
    %1049 = vmatpush1.xpose.msra.mxu0 0.0
    %1050 = vmatprep.subr.mxu0 0.0
    %1051 = vmatpush1.xpose.msra.mxu0 0.0
    %1052 = vmatprep.subr.mxu0 0.0
    %1053 = vmatpush1.xpose.msra.mxu0 0.0
    %1054 = vmatprep.subr.mxu0 0.0
    %1055 = vmatpush1.xpose.msra.mxu0 0.0
    %1056 = vmatprep.subr.mxu0 0.0
    %1057 = vmatpush1.xpose.msra.mxu0 0.0
    %1058 = vmatprep.subr.mxu0 0.0
    %1059 = vmatpush1.xpose.msra.mxu0 0.0
    %1060 = vmatprep.subr.mxu0 0.0
    %1061 = vmatpush1.xpose.msra.mxu0 0.0
    %1062 = vmatprep.subr.mxu0 0.0
    %1063 = vmatpush1.xpose.msra.mxu0 0.0
    %1064 = vmatprep.subr.mxu0 0.0
    %1065 = vmatpush1.xpose.msra.mxu0 0.0
    %1066 = vmatprep.subr.mxu0 0.0
    %1067 = vmatpush1.xpose.msra.mxu0 0.0
    %1068 = vmatprep.mubr.f32.mxu0 0.0
    %1069 = vmatmul.mubr.f32.gmra.mrb[0].mxu0 %v998
    %v1070 = vpop.f32.mrb[0].mxu0
    %v1071 = vadd.f32 0.0, %v1070
    %v1072 = vpop.f32.mrb[0].mxu0
    %1073 = vdwg.mxu0
    %v1074 = vsel %vm769, %v694, 0
    %v1076 = vsel %vm769, %v714, 0
    %v1078 = vsel %vm769, %v716, 0
    %1080 = vmatprep.subr.mxu0 0.0
    %1081 = vmatpush1.xpose.msra.mxu0 %v1076
    %1082 = vmatprep.subr.mxu0 0.0
    %1083 = vmatpush1.xpose.msra.mxu0 %v1078
    %1084 = vmatprep.subr.mxu0 0.0
    %1085 = vmatpush1.xpose.msra.mxu0 0.0
    %1086 = vmatprep.subr.mxu0 0.0
    %1087 = vmatpush1.xpose.msra.mxu0 0.0
    %1088 = vmatprep.subr.mxu0 0.0
    %1089 = vmatpush1.xpose.msra.mxu0 0.0
    %1090 = vmatprep.subr.mxu0 0.0
    %1091 = vmatpush1.xpose.msra.mxu0 0.0
    %1092 = vmatprep.subr.mxu0 0.0
    %1093 = vmatpush1.xpose.msra.mxu0 0.0
    %1094 = vmatprep.subr.mxu0 0.0
    %1095 = vmatpush1.xpose.msra.mxu0 0.0
    %1096 = vmatprep.subr.mxu0 0.0
    %1097 = vmatpush1.xpose.msra.mxu0 0.0
    %1098 = vmatprep.subr.mxu0 0.0
    %1099 = vmatpush1.xpose.msra.mxu0 0.0
    %1100 = vmatprep.subr.mxu0 0.0
    %1101 = vmatpush1.xpose.msra.mxu0 0.0
    %1102 = vmatprep.subr.mxu0 0.0
    %1103 = vmatpush1.xpose.msra.mxu0 0.0
    %1104 = vmatprep.subr.mxu0 0.0
    %1105 = vmatpush1.xpose.msra.mxu0 0.0
    %1106 = vmatprep.subr.mxu0 0.0
    %1107 = vmatpush1.xpose.msra.mxu0 0.0
    %1108 = vmatprep.subr.mxu0 0.0
    %1109 = vmatpush1.xpose.msra.mxu0 0.0
    %1110 = vmatprep.subr.mxu0 0.0
    %1111 = vmatpush1.xpose.msra.mxu0 0.0
    %1112 = vmatprep.subr.mxu0 0.0
    %1113 = vmatpush1.xpose.msra.mxu0 0.0
    %1114 = vmatprep.subr.mxu0 0.0
    %1115 = vmatpush1.xpose.msra.mxu0 0.0
    %1116 = vmatprep.subr.mxu0 0.0
    %1117 = vmatpush1.xpose.msra.mxu0 0.0
    %1118 = vmatprep.subr.mxu0 0.0
    %1119 = vmatpush1.xpose.msra.mxu0 0.0
    %1120 = vmatprep.subr.mxu0 0.0
    %1121 = vmatpush1.xpose.msra.mxu0 0.0
    %1122 = vmatprep.subr.mxu0 0.0
    %1123 = vmatpush1.xpose.msra.mxu0 0.0
    %1124 = vmatprep.subr.mxu0 0.0
    %1125 = vmatpush1.xpose.msra.mxu0 0.0
    %1126 = vmatprep.subr.mxu0 0.0
    %1127 = vmatpush1.xpose.msra.mxu0 0.0
    %1128 = vmatprep.subr.mxu0 0.0
    %1129 = vmatpush1.xpose.msra.mxu0 0.0
    %1130 = vmatprep.subr.mxu0 0.0
    %1131 = vmatpush1.xpose.msra.mxu0 0.0
    %1132 = vmatprep.subr.mxu0 0.0
    %1133 = vmatpush1.xpose.msra.mxu0 0.0
    %1134 = vmatprep.subr.mxu0 0.0
    %1135 = vmatpush1.xpose.msra.mxu0 0.0
    %1136 = vmatprep.subr.mxu0 0.0
    %1137 = vmatpush1.xpose.msra.mxu0 0.0
    %1138 = vmatprep.subr.mxu0 0.0
    %1139 = vmatpush1.xpose.msra.mxu0 0.0
    %1140 = vmatprep.subr.mxu0 0.0
    %1141 = vmatpush1.xpose.msra.mxu0 0.0
    %1142 = vmatprep.subr.mxu0 0.0
    %1143 = vmatpush1.xpose.msra.mxu0 0.0
    %1144 = vmatprep.mubr.f32.mxu0 0.0
    %1145 = vmatmul.mubr.f32.gmra.mrb[0].mxu0 %v1074
    %v1146 = vpop.f32.mrb[0].mxu0
    %v1147 = vadd.f32 0.0, %v1146
    %v1148 = vpop.f32.mrb[0].mxu0
    %1149 = vdwg.mxu0
    %v1150 = vsel %vm769, %v696, 0
    %v1152 = vsel %vm769, %v718, 0
    %v1154 = vsel %vm769, %v720, 0
    %1156 = vmatprep.subr.mxu0 0.0
    %1157 = vmatpush1.xpose.msra.mxu0 %v1152
    %1158 = vmatprep.subr.mxu0 0.0
    %1159 = vmatpush1.xpose.msra.mxu0 %v1154
    %1160 = vmatprep.subr.mxu0 0.0
    %1161 = vmatpush1.xpose.msra.mxu0 0.0
    %1162 = vmatprep.subr.mxu0 0.0
    %1163 = vmatpush1.xpose.msra.mxu0 0.0
    %1164 = vmatprep.subr.mxu0 0.0
    %1165 = vmatpush1.xpose.msra.mxu0 0.0
    %1166 = vmatprep.subr.mxu0 0.0
    %1167 = vmatpush1.xpose.msra.mxu0 0.0
    %1168 = vmatprep.subr.mxu0 0.0
    %1169 = vmatpush1.xpose.msra.mxu0 0.0
    %1170 = vmatprep.subr.mxu0 0.0
    %1171 = vmatpush1.xpose.msra.mxu0 0.0
    %1172 = vmatprep.subr.mxu0 0.0
    %1173 = vmatpush1.xpose.msra.mxu0 0.0
    %1174 = vmatprep.subr.mxu0 0.0
    %1175 = vmatpush1.xpose.msra.mxu0 0.0
    %1176 = vmatprep.subr.mxu0 0.0
    %1177 = vmatpush1.xpose.msra.mxu0 0.0
    %1178 = vmatprep.subr.mxu0 0.0
    %1179 = vmatpush1.xpose.msra.mxu0 0.0
    %1180 = vmatprep.subr.mxu0 0.0
    %1181 = vmatpush1.xpose.msra.mxu0 0.0
    %1182 = vmatprep.subr.mxu0 0.0
    %1183 = vmatpush1.xpose.msra.mxu0 0.0
    %1184 = vmatprep.subr.mxu0 0.0
    %1185 = vmatpush1.xpose.msra.mxu0 0.0
    %1186 = vmatprep.subr.mxu0 0.0
    %1187 = vmatpush1.xpose.msra.mxu0 0.0
    %1188 = vmatprep.subr.mxu0 0.0
    %1189 = vmatpush1.xpose.msra.mxu0 0.0
    %1190 = vmatprep.subr.mxu0 0.0
    %1191 = vmatpush1.xpose.msra.mxu0 0.0
    %1192 = vmatprep.subr.mxu0 0.0
    %1193 = vmatpush1.xpose.msra.mxu0 0.0
    %1194 = vmatprep.subr.mxu0 0.0
    %1195 = vmatpush1.xpose.msra.mxu0 0.0
    %1196 = vmatprep.subr.mxu0 0.0
    %1197 = vmatpush1.xpose.msra.mxu0 0.0
    %1198 = vmatprep.subr.mxu0 0.0
    %1199 = vmatpush1.xpose.msra.mxu0 0.0
    %1200 = vmatprep.subr.mxu0 0.0
    %1201 = vmatpush1.xpose.msra.mxu0 0.0
    %1202 = vmatprep.subr.mxu0 0.0
    %1203 = vmatpush1.xpose.msra.mxu0 0.0
    %1204 = vmatprep.subr.mxu0 0.0
    %1205 = vmatpush1.xpose.msra.mxu0 0.0
    %1206 = vmatprep.subr.mxu0 0.0
    %1207 = vmatpush1.xpose.msra.mxu0 0.0
    %1208 = vmatprep.subr.mxu0 0.0
    %1209 = vmatpush1.xpose.msra.mxu0 0.0
    %1210 = vmatprep.subr.mxu0 0.0
    %1211 = vmatpush1.xpose.msra.mxu0 0.0
    %1212 = vmatprep.subr.mxu0 0.0
    %1213 = vmatpush1.xpose.msra.mxu0 0.0
    %1214 = vmatprep.subr.mxu0 0.0
    %1215 = vmatpush1.xpose.msra.mxu0 0.0
    %1216 = vmatprep.subr.mxu0 0.0
    %1217 = vmatpush1.xpose.msra.mxu0 0.0
    %1218 = vmatprep.subr.mxu0 0.0
    %1219 = vmatpush1.xpose.msra.mxu0 0.0
    %1220 = vmatprep.mubr.f32.mxu0 0.0
    %1221 = vmatmul.mubr.f32.gmra.mrb[0].mxu0 %v1150
    %v1222 = vpop.f32.mrb[0].mxu0
    %v1223 = vadd.f32 0.0, %v1222
    %v1224 = vpop.f32.mrb[0].mxu0
    %1225 = vdwg.mxu0
    %v1226 = vsel %vm769, %v698, 0
    %v1228 = vsel %vm769, %v722, 0
    %v1230 = vsel %vm769, %v724, 0
    %1232 = vmatprep.subr.mxu0 0.0
    %1233 = vmatpush1.xpose.msra.mxu0 %v1228
    %1234 = vmatprep.subr.mxu0 0.0
    %1235 = vmatpush1.xpose.msra.mxu0 %v1230
    %1236 = vmatprep.subr.mxu0 0.0
    %1237 = vmatpush1.xpose.msra.mxu0 0.0
    %1238 = vmatprep.subr.mxu0 0.0
    %1239 = vmatpush1.xpose.msra.mxu0 0.0
    %1240 = vmatprep.subr.mxu0 0.0
    %1241 = vmatpush1.xpose.msra.mxu0 0.0
    %1242 = vmatprep.subr.mxu0 0.0
    %1243 = vmatpush1.xpose.msra.mxu0 0.0
    %1244 = vmatprep.subr.mxu0 0.0
    %1245 = vmatpush1.xpose.msra.mxu0 0.0
    %1246 = vmatprep.subr.mxu0 0.0
    %1247 = vmatpush1.xpose.msra.mxu0 0.0
    %1248 = vmatprep.subr.mxu0 0.0
    %1249 = vmatpush1.xpose.msra.mxu0 0.0
    %1250 = vmatprep.subr.mxu0 0.0
    %1251 = vmatpush1.xpose.msra.mxu0 0.0
    %1252 = vmatprep.subr.mxu0 0.0
    %1253 = vmatpush1.xpose.msra.mxu0 0.0
    %1254 = vmatprep.subr.mxu0 0.0
    %1255 = vmatpush1.xpose.msra.mxu0 0.0
    %1256 = vmatprep.subr.mxu0 0.0
    %1257 = vmatpush1.xpose.msra.mxu0 0.0
    %1258 = vmatprep.subr.mxu0 0.0
    %1259 = vmatpush1.xpose.msra.mxu0 0.0
    %1260 = vmatprep.subr.mxu0 0.0
    %1261 = vmatpush1.xpose.msra.mxu0 0.0
    %1262 = vmatprep.subr.mxu0 0.0
    %1263 = vmatpush1.xpose.msra.mxu0 0.0
    %1264 = vmatprep.subr.mxu0 0.0
    %1265 = vmatpush1.xpose.msra.mxu0 0.0
    %1266 = vmatprep.subr.mxu0 0.0
    %1267 = vmatpush1.xpose.msra.mxu0 0.0
    %1268 = vmatprep.subr.mxu0 0.0
    %1269 = vmatpush1.xpose.msra.mxu0 0.0
    %1270 = vmatprep.subr.mxu0 0.0
    %1271 = vmatpush1.xpose.msra.mxu0 0.0
    %1272 = vmatprep.subr.mxu0 0.0
    %1273 = vmatpush1.xpose.msra.mxu0 0.0
    %1274 = vmatprep.subr.mxu0 0.0
    %1275 = vmatpush1.xpose.msra.mxu0 0.0
    %1276 = vmatprep.subr.mxu0 0.0
    %1277 = vmatpush1.xpose.msra.mxu0 0.0
    %1278 = vmatprep.subr.mxu0 0.0
    %1279 = vmatpush1.xpose.msra.mxu0 0.0
    %1280 = vmatprep.subr.mxu0 0.0
    %1281 = vmatpush1.xpose.msra.mxu0 0.0
    %1282 = vmatprep.subr.mxu0 0.0
    %1283 = vmatpush1.xpose.msra.mxu0 0.0
    %1284 = vmatprep.subr.mxu0 0.0
    %1285 = vmatpush1.xpose.msra.mxu0 0.0
    %1286 = vmatprep.subr.mxu0 0.0
    %1287 = vmatpush1.xpose.msra.mxu0 0.0
    %1288 = vmatprep.subr.mxu0 0.0
    %1289 = vmatpush1.xpose.msra.mxu0 0.0
    %1290 = vmatprep.subr.mxu0 0.0
    %1291 = vmatpush1.xpose.msra.mxu0 0.0
    %1292 = vmatprep.subr.mxu0 0.0
    %1293 = vmatpush1.xpose.msra.mxu0 0.0
    %1294 = vmatprep.subr.mxu0 0.0
    %1295 = vmatpush1.xpose.msra.mxu0 0.0
    %1296 = vmatprep.mubr.f32.mxu0 0.0
    %1297 = vmatmul.mubr.f32.gmra.mrb[0].mxu0 %v1226
    %v1298 = vpop.f32.mrb[0].mxu0
    %v1299 = vadd.f32 0.0, %v1298
    %v1300 = vpop.f32.mrb[0].mxu0
    %1301 = vdwg.mxu0
    %v1302 = vsel %vm769, %v700, 0
    %v1304 = vsel %vm769, %v726, 0
    %v1306 = vsel %vm769, %v728, 0
    %1308 = vmatprep.subr.mxu0 0.0
    %1309 = vmatpush1.xpose.msra.mxu0 %v1304
    %1310 = vmatprep.subr.mxu0 0.0
    %1311 = vmatpush1.xpose.msra.mxu0 %v1306
    %1312 = vmatprep.subr.mxu0 0.0
    %1313 = vmatpush1.xpose.msra.mxu0 0.0
    %1314 = vmatprep.subr.mxu0 0.0
    %1315 = vmatpush1.xpose.msra.mxu0 0.0
    %1316 = vmatprep.subr.mxu0 0.0
    %1317 = vmatpush1.xpose.msra.mxu0 0.0
    %1318 = vmatprep.subr.mxu0 0.0
    %1319 = vmatpush1.xpose.msra.mxu0 0.0
    %1320 = vmatprep.subr.mxu0 0.0
    %1321 = vmatpush1.xpose.msra.mxu0 0.0
    %1322 = vmatprep.subr.mxu0 0.0
    %1323 = vmatpush1.xpose.msra.mxu0 0.0
    %1324 = vmatprep.subr.mxu0 0.0
    %1325 = vmatpush1.xpose.msra.mxu0 0.0
    %1326 = vmatprep.subr.mxu0 0.0
    %1327 = vmatpush1.xpose.msra.mxu0 0.0
    %1328 = vmatprep.subr.mxu0 0.0
    %1329 = vmatpush1.xpose.msra.mxu0 0.0
    %1330 = vmatprep.subr.mxu0 0.0
    %1331 = vmatpush1.xpose.msra.mxu0 0.0
    %1332 = vmatprep.subr.mxu0 0.0
    %1333 = vmatpush1.xpose.msra.mxu0 0.0
    %1334 = vmatprep.subr.mxu0 0.0
    %1335 = vmatpush1.xpose.msra.mxu0 0.0
    %1336 = vmatprep.subr.mxu0 0.0
    %1337 = vmatpush1.xpose.msra.mxu0 0.0
    %1338 = vmatprep.subr.mxu0 0.0
    %1339 = vmatpush1.xpose.msra.mxu0 0.0
    %1340 = vmatprep.subr.mxu0 0.0
    %1341 = vmatpush1.xpose.msra.mxu0 0.0
    %1342 = vmatprep.subr.mxu0 0.0
    %1343 = vmatpush1.xpose.msra.mxu0 0.0
    %1344 = vmatprep.subr.mxu0 0.0
    %1345 = vmatpush1.xpose.msra.mxu0 0.0
    %1346 = vmatprep.subr.mxu0 0.0
    %1347 = vmatpush1.xpose.msra.mxu0 0.0
    %1348 = vmatprep.subr.mxu0 0.0
    %1349 = vmatpush1.xpose.msra.mxu0 0.0
    %1350 = vmatprep.subr.mxu0 0.0
    %1351 = vmatpush1.xpose.msra.mxu0 0.0
    %1352 = vmatprep.subr.mxu0 0.0
    %1353 = vmatpush1.xpose.msra.mxu0 0.0
    %1354 = vmatprep.subr.mxu0 0.0
    %1355 = vmatpush1.xpose.msra.mxu0 0.0
    %1356 = vmatprep.subr.mxu0 0.0
    %1357 = vmatpush1.xpose.msra.mxu0 0.0
    %1358 = vmatprep.subr.mxu0 0.0
    %1359 = vmatpush1.xpose.msra.mxu0 0.0
    %1360 = vmatprep.subr.mxu0 0.0
    %1361 = vmatpush1.xpose.msra.mxu0 0.0
    %1362 = vmatprep.subr.mxu0 0.0
    %1363 = vmatpush1.xpose.msra.mxu0 0.0
    %1364 = vmatprep.subr.mxu0 0.0
    %1365 = vmatpush1.xpose.msra.mxu0 0.0
    %1366 = vmatprep.subr.mxu0 0.0
    %1367 = vmatpush1.xpose.msra.mxu0 0.0
    %1368 = vmatprep.subr.mxu0 0.0
    %1369 = vmatpush1.xpose.msra.mxu0 0.0
    %1370 = vmatprep.subr.mxu0 0.0
    %1371 = vmatpush1.xpose.msra.mxu0 0.0
    %1372 = vmatprep.mubr.f32.mxu0 0.0
    %1373 = vmatmul.mubr.f32.gmra.mrb[0].mxu0 %v1302
    %v1374 = vpop.f32.mrb[0].mxu0
    %v1375 = vadd.f32 0.0, %v1374
    %v1376 = vpop.f32.mrb[0].mxu0
    %1377 = vdwg.mxu0
    %vm1378 = vcmask 130048
    %v1379 = vsel %vm1378, %v843, -inf
    %1380 = vmax.xlane.f32.xlu0 %v1379
    %v1381 = vpop.xlane.xlu0 %1380
    %v1382 = vsel %vm1378, %v919, -inf
    %1383 = vmax.xlane.f32.xlu0 %v1382
    %v1384 = vpop.xlane.xlu0 %1383
    %v1385 = vsel %vm1378, %v995, -inf
    %1386 = vmax.xlane.f32.xlu0 %v1385
    %v1387 = vpop.xlane.xlu0 %1386
    %v1388 = vsel %vm1378, %v1071, -inf
    %1389 = vmax.xlane.f32.xlu0 %v1388
    %v1390 = vpop.xlane.xlu0 %1389
    %v1391 = vsel %vm1378, %v1147, -inf
    %1392 = vmax.xlane.f32.xlu0 %v1391
    %v1393 = vpop.xlane.xlu0 %1392
    %v1394 = vsel %vm1378, %v1223, -inf
    %1395 = vmax.xlane.f32.xlu0 %v1394
    %v1396 = vpop.xlane.xlu0 %1395
    %v1397 = vsel %vm1378, %v1299, -inf
    %1398 = vmax.xlane.f32.xlu0 %v1397
    %v1399 = vpop.xlane.xlu0 %1398
    %v1400 = vsel %vm1378, %v1375, -inf
    %1401 = vmax.xlane.f32.xlu0 %v1400
    %v1402 = vpop.xlane.xlu0 %1401
    %v1403 = vsub.f32 %v843, %v1381
    %v1404 = vsub.f32 %v919, %v1384
    %v1405 = vsub.f32 %v995, %v1387
    %v1406 = vsub.f32 %v1071, %v1390
    %v1407 = vsub.f32 %v1147, %v1393
    %v1408 = vsub.f32 %v1223, %v1396
    %v1409 = vsub.f32 %v1299, %v1399
    %v1410 = vsub.f32 %v1375, %v1402
    %v1411 = vmul.f32 %v1403, 1.442695
    %v1412 = vpow.pop %v1411
    %v1413 = vmul.f32 %v1404, 1.442695
    %v1414 = vpow.pop %v1413
    %v1415 = vmul.f32 %v1405, 1.442695
    %v1416 = vpow.pop %v1415
    %v1417 = vmul.f32 %v1406, 1.442695
    %v1418 = vpow.pop %v1417
    %v1419 = vmul.f32 %v1407, 1.442695
    %v1420 = vpow.pop %v1419
    %v1421 = vmul.f32 %v1408, 1.442695
    %v1422 = vpow.pop %v1421
    %v1423 = vmul.f32 %v1409, 1.442695
    %v1424 = vpow.pop %v1423
    %v1425 = vmul.f32 %v1410, 1.442695
    %v1426 = vpow.pop %v1425
    %v1427 = vsel %vm1378, %v1412, 0.0
    %1428 = vadd.xlane.f32.xlu0 %v1427
    %v1429 = vpop.xlane.xlu0 %1428
    %v1430 = vsel %vm1378, %v1414, 0.0
    %1431 = vadd.xlane.f32.xlu0 %v1430
    %v1432 = vpop.xlane.xlu0 %1431
    %v1433 = vsel %vm1378, %v1416, 0.0
    %1434 = vadd.xlane.f32.xlu0 %v1433
    %v1435 = vpop.xlane.xlu0 %1434
    %v1436 = vsel %vm1378, %v1418, 0.0
    %1437 = vadd.xlane.f32.xlu0 %v1436
    %v1438 = vpop.xlane.xlu0 %1437
    %v1439 = vsel %vm1378, %v1420, 0.0
    %1440 = vadd.xlane.f32.xlu0 %v1439
    %v1441 = vpop.xlane.xlu0 %1440
    %v1442 = vsel %vm1378, %v1422, 0.0
    %1443 = vadd.xlane.f32.xlu0 %v1442
    %v1444 = vpop.xlane.xlu0 %1443
    %v1445 = vsel %vm1378, %v1424, 0.0
    %1446 = vadd.xlane.f32.xlu0 %v1445
    %v1447 = vpop.xlane.xlu0 %1446
    %v1448 = vsel %vm1378, %v1426, 0.0
    %1449 = vadd.xlane.f32.xlu0 %v1448
    %v1450 = vpop.xlane.xlu0 %1449
    %v1451 = vrcp.pop %v1429
    %v1452 = vrcp.pop %v1432
    %v1453 = vrcp.pop %v1435
    %v1454 = vrcp.pop %v1438
    %v1455 = vrcp.pop %v1441
    %v1456 = vrcp.pop %v1444
    %v1457 = vrcp.pop %v1447
    %v1458 = vrcp.pop %v1450
    %v1459 = vmul.f32 %v1412, %v1451
    %v1460 = vmul.f32 %v1414, %v1452
    %v1461 = vmul.f32 %v1416, %v1453
    %v1462 = vmul.f32 %v1418, %v1454
    %v1463 = vmul.f32 %v1420, %v1455
    %v1464 = vmul.f32 %v1422, %v1456
    %v1465 = vmul.f32 %v1424, %v1457
    %v1466 = vmul.f32 %v1426, %v1458
    %v1468 = vsel %vm1378, %v1459, 0
    %1470 = vmatprep.subr.mxu0 0.0
    %1471 = vmatpush1.msra.mxu0 %v669
    %1472 = vmatprep.subr.mxu0 0.0
    %1473 = vmatpush1.msra.mxu0 %v674
    %1474 = vmatprep.subr.mxu0 0.0
    %1475 = vmatpush1.msra.mxu0 0.0
    %1476 = vmatprep.subr.mxu0 0.0
    %1477 = vmatpush1.msra.mxu0 0.0
    %1478 = vmatprep.subr.mxu0 0.0
    %1479 = vmatpush1.msra.mxu0 0.0
    %1480 = vmatprep.subr.mxu0 0.0
    %1481 = vmatpush1.msra.mxu0 0.0
    %1482 = vmatprep.subr.mxu0 0.0
    %1483 = vmatpush1.msra.mxu0 0.0
    %1484 = vmatprep.subr.mxu0 0.0
    %1485 = vmatpush1.msra.mxu0 0.0
    %1486 = vmatprep.subr.mxu0 0.0
    %1487 = vmatpush1.msra.mxu0 0.0
    %1488 = vmatprep.subr.mxu0 0.0
    %1489 = vmatpush1.msra.mxu0 0.0
    %1490 = vmatprep.subr.mxu0 0.0
    %1491 = vmatpush1.msra.mxu0 0.0
    %1492 = vmatprep.subr.mxu0 0.0
    %1493 = vmatpush1.msra.mxu0 0.0
    %1494 = vmatprep.subr.mxu0 0.0
    %1495 = vmatpush1.msra.mxu0 0.0
    %1496 = vmatprep.subr.mxu0 0.0
    %1497 = vmatpush1.msra.mxu0 0.0
    %1498 = vmatprep.subr.mxu0 0.0
    %1499 = vmatpush1.msra.mxu0 0.0
    %1500 = vmatprep.subr.mxu0 0.0
    %1501 = vmatpush1.msra.mxu0 0.0
    %1502 = vmatprep.subr.mxu0 0.0
    %1503 = vmatpush1.msra.mxu0 0.0
    %1504 = vmatprep.subr.mxu0 0.0
    %1505 = vmatpush1.msra.mxu0 0.0
    %1506 = vmatprep.subr.mxu0 0.0
    %1507 = vmatpush1.msra.mxu0 0.0
    %1508 = vmatprep.subr.mxu0 0.0
    %1509 = vmatpush1.msra.mxu0 0.0
    %1510 = vmatprep.subr.mxu0 0.0
    %1511 = vmatpush1.msra.mxu0 0.0
    %1512 = vmatprep.subr.mxu0 0.0
    %1513 = vmatpush1.msra.mxu0 0.0
    %1514 = vmatprep.subr.mxu0 0.0
    %1515 = vmatpush1.msra.mxu0 0.0
    %1516 = vmatprep.subr.mxu0 0.0
    %1517 = vmatpush1.msra.mxu0 0.0
    %1518 = vmatprep.subr.mxu0 0.0
    %1519 = vmatpush1.msra.mxu0 0.0
    %1520 = vmatprep.subr.mxu0 0.0
    %1521 = vmatpush1.msra.mxu0 0.0
    %1522 = vmatprep.subr.mxu0 0.0
    %1523 = vmatpush1.msra.mxu0 0.0
    %1524 = vmatprep.subr.mxu0 0.0
    %1525 = vmatpush1.msra.mxu0 0.0
    %1526 = vmatprep.subr.mxu0 0.0
    %1527 = vmatpush1.msra.mxu0 0.0
    %1528 = vmatprep.subr.mxu0 0.0
    %1529 = vmatpush1.msra.mxu0 0.0
    %1530 = vmatprep.subr.mxu0 0.0
    %1531 = vmatpush1.msra.mxu0 0.0
    %1532 = vmatprep.subr.mxu0 0.0
    %1533 = vmatpush1.msra.mxu0 0.0
    %1534 = vmatprep.mubr.f32.mxu0 0.0
    %1535 = vmatmul.mubr.f32.gmra.mrb[0].mxu0 %v1468
    %v1536 = vpop.f32.mrb[0].mxu0
    %v1537 = vadd.f32 0.0, %v1536
    %v1538 = vpop.f32.mrb[0].mxu0
    %1539 = vdwg.mxu0
    %v1541 = vsel %vm1378, %v1460, 0
    %1543 = vmatprep.subr.mxu0 0.0
    %1544 = vmatpush1.msra.mxu0 %v679
    %1545 = vmatprep.subr.mxu0 0.0
    %1546 = vmatpush1.msra.mxu0 %v684
    %1547 = vmatprep.subr.mxu0 0.0
    %1548 = vmatpush1.msra.mxu0 0.0
    %1549 = vmatprep.subr.mxu0 0.0
    %1550 = vmatpush1.msra.mxu0 0.0
    %1551 = vmatprep.subr.mxu0 0.0
    %1552 = vmatpush1.msra.mxu0 0.0
    %1553 = vmatprep.subr.mxu0 0.0
    %1554 = vmatpush1.msra.mxu0 0.0
    %1555 = vmatprep.subr.mxu0 0.0
    %1556 = vmatpush1.msra.mxu0 0.0
    %1557 = vmatprep.subr.mxu0 0.0
    %1558 = vmatpush1.msra.mxu0 0.0
    %1559 = vmatprep.subr.mxu0 0.0
    %1560 = vmatpush1.msra.mxu0 0.0
    %1561 = vmatprep.subr.mxu0 0.0
    %1562 = vmatpush1.msra.mxu0 0.0
    %1563 = vmatprep.subr.mxu0 0.0
    %1564 = vmatpush1.msra.mxu0 0.0
    %1565 = vmatprep.subr.mxu0 0.0
    %1566 = vmatpush1.msra.mxu0 0.0
    %1567 = vmatprep.subr.mxu0 0.0
    %1568 = vmatpush1.msra.mxu0 0.0
    %1569 = vmatprep.subr.mxu0 0.0
    %1570 = vmatpush1.msra.mxu0 0.0
    %1571 = vmatprep.subr.mxu0 0.0
    %1572 = vmatpush1.msra.mxu0 0.0
    %1573 = vmatprep.subr.mxu0 0.0
    %1574 = vmatpush1.msra.mxu0 0.0
    %1575 = vmatprep.subr.mxu0 0.0
    %1576 = vmatpush1.msra.mxu0 0.0
    %1577 = vmatprep.subr.mxu0 0.0
    %1578 = vmatpush1.msra.mxu0 0.0
    %1579 = vmatprep.subr.mxu0 0.0
    %1580 = vmatpush1.msra.mxu0 0.0
    %1581 = vmatprep.subr.mxu0 0.0
    %1582 = vmatpush1.msra.mxu0 0.0
    %1583 = vmatprep.subr.mxu0 0.0
    %1584 = vmatpush1.msra.mxu0 0.0
    %1585 = vmatprep.subr.mxu0 0.0
    %1586 = vmatpush1.msra.mxu0 0.0
    %1587 = vmatprep.subr.mxu0 0.0
    %1588 = vmatpush1.msra.mxu0 0.0
    %1589 = vmatprep.subr.mxu0 0.0
    %1590 = vmatpush1.msra.mxu0 0.0
    %1591 = vmatprep.subr.mxu0 0.0
    %1592 = vmatpush1.msra.mxu0 0.0
    %1593 = vmatprep.subr.mxu0 0.0
    %1594 = vmatpush1.msra.mxu0 0.0
    %1595 = vmatprep.subr.mxu0 0.0
    %1596 = vmatpush1.msra.mxu0 0.0
    %1597 = vmatprep.subr.mxu0 0.0
    %1598 = vmatpush1.msra.mxu0 0.0
    %1599 = vmatprep.subr.mxu0 0.0
    %1600 = vmatpush1.msra.mxu0 0.0
    %1601 = vmatprep.subr.mxu0 0.0
    %1602 = vmatpush1.msra.mxu0 0.0
    %1603 = vmatprep.subr.mxu0 0.0
    %1604 = vmatpush1.msra.mxu0 0.0
    %1605 = vmatprep.subr.mxu0 0.0
    %1606 = vmatpush1.msra.mxu0 0.0
    %1607 = vmatprep.mubr.f32.mxu0 0.0
    %1608 = vmatmul.mubr.f32.gmra.mrb[0].mxu0 %v1541
    %v1609 = vpop.f32.mrb[0].mxu0
    %v1610 = vadd.f32 0.0, %v1609
    %v1611 = vpop.f32.mrb[0].mxu0
    %1612 = vdwg.mxu0
    %v1614 = vsel %vm1378, %v1461, 0
    %1616 = vmatprep.subr.mxu0 0.0
    %1617 = vmatpush1.msra.mxu0 %v734
    %1618 = vmatprep.subr.mxu0 0.0
    %1619 = vmatpush1.msra.mxu0 %v736
    %1620 = vmatprep.subr.mxu0 0.0
    %1621 = vmatpush1.msra.mxu0 0.0
    %1622 = vmatprep.subr.mxu0 0.0
    %1623 = vmatpush1.msra.mxu0 0.0
    %1624 = vmatprep.subr.mxu0 0.0
    %1625 = vmatpush1.msra.mxu0 0.0
    %1626 = vmatprep.subr.mxu0 0.0
    %1627 = vmatpush1.msra.mxu0 0.0
    %1628 = vmatprep.subr.mxu0 0.0
    %1629 = vmatpush1.msra.mxu0 0.0
    %1630 = vmatprep.subr.mxu0 0.0
    %1631 = vmatpush1.msra.mxu0 0.0
    %1632 = vmatprep.subr.mxu0 0.0
    %1633 = vmatpush1.msra.mxu0 0.0
    %1634 = vmatprep.subr.mxu0 0.0
    %1635 = vmatpush1.msra.mxu0 0.0
    %1636 = vmatprep.subr.mxu0 0.0
    %1637 = vmatpush1.msra.mxu0 0.0
    %1638 = vmatprep.subr.mxu0 0.0
    %1639 = vmatpush1.msra.mxu0 0.0
    %1640 = vmatprep.subr.mxu0 0.0
    %1641 = vmatpush1.msra.mxu0 0.0
    %1642 = vmatprep.subr.mxu0 0.0
    %1643 = vmatpush1.msra.mxu0 0.0
    %1644 = vmatprep.subr.mxu0 0.0
    %1645 = vmatpush1.msra.mxu0 0.0
    %1646 = vmatprep.subr.mxu0 0.0
    %1647 = vmatpush1.msra.mxu0 0.0
    %1648 = vmatprep.subr.mxu0 0.0
    %1649 = vmatpush1.msra.mxu0 0.0
    %1650 = vmatprep.subr.mxu0 0.0
    %1651 = vmatpush1.msra.mxu0 0.0
    %1652 = vmatprep.subr.mxu0 0.0
    %1653 = vmatpush1.msra.mxu0 0.0
    %1654 = vmatprep.subr.mxu0 0.0
    %1655 = vmatpush1.msra.mxu0 0.0
    %1656 = vmatprep.subr.mxu0 0.0
    %1657 = vmatpush1.msra.mxu0 0.0
    %1658 = vmatprep.subr.mxu0 0.0
    %1659 = vmatpush1.msra.mxu0 0.0
    %1660 = vmatprep.subr.mxu0 0.0
    %1661 = vmatpush1.msra.mxu0 0.0
    %1662 = vmatprep.subr.mxu0 0.0
    %1663 = vmatpush1.msra.mxu0 0.0
    %1664 = vmatprep.subr.mxu0 0.0
    %1665 = vmatpush1.msra.mxu0 0.0
    %1666 = vmatprep.subr.mxu0 0.0
    %1667 = vmatpush1.msra.mxu0 0.0
    %1668 = vmatprep.subr.mxu0 0.0
    %1669 = vmatpush1.msra.mxu0 0.0
    %1670 = vmatprep.subr.mxu0 0.0
    %1671 = vmatpush1.msra.mxu0 0.0
    %1672 = vmatprep.subr.mxu0 0.0
    %1673 = vmatpush1.msra.mxu0 0.0
    %1674 = vmatprep.subr.mxu0 0.0
    %1675 = vmatpush1.msra.mxu0 0.0
    %1676 = vmatprep.subr.mxu0 0.0
    %1677 = vmatpush1.msra.mxu0 0.0
    %1678 = vmatprep.subr.mxu0 0.0
    %1679 = vmatpush1.msra.mxu0 0.0
    %1680 = vmatprep.mubr.f32.mxu0 0.0
    %1681 = vmatmul.mubr.f32.gmra.mrb[0].mxu0 %v1614
    %v1682 = vpop.f32.mrb[0].mxu0
    %v1683 = vadd.f32 0.0, %v1682
    %v1684 = vpop.f32.mrb[0].mxu0
    %1685 = vdwg.mxu0
    %v1687 = vsel %vm1378, %v1462, 0
    %1689 = vmatprep.subr.mxu0 0.0
    %1690 = vmatpush1.msra.mxu0 %v738
    %1691 = vmatprep.subr.mxu0 0.0
    %1692 = vmatpush1.msra.mxu0 %v740
    %1693 = vmatprep.subr.mxu0 0.0
    %1694 = vmatpush1.msra.mxu0 0.0
    %1695 = vmatprep.subr.mxu0 0.0
    %1696 = vmatpush1.msra.mxu0 0.0
    %1697 = vmatprep.subr.mxu0 0.0
    %1698 = vmatpush1.msra.mxu0 0.0
    %1699 = vmatprep.subr.mxu0 0.0
    %1700 = vmatpush1.msra.mxu0 0.0
    %1701 = vmatprep.subr.mxu0 0.0
    %1702 = vmatpush1.msra.mxu0 0.0
    %1703 = vmatprep.subr.mxu0 0.0
    %1704 = vmatpush1.msra.mxu0 0.0
    %1705 = vmatprep.subr.mxu0 0.0
    %1706 = vmatpush1.msra.mxu0 0.0
    %1707 = vmatprep.subr.mxu0 0.0
    %1708 = vmatpush1.msra.mxu0 0.0
    %1709 = vmatprep.subr.mxu0 0.0
    %1710 = vmatpush1.msra.mxu0 0.0
    %1711 = vmatprep.subr.mxu0 0.0
    %1712 = vmatpush1.msra.mxu0 0.0
    %1713 = vmatprep.subr.mxu0 0.0
    %1714 = vmatpush1.msra.mxu0 0.0
    %1715 = vmatprep.subr.mxu0 0.0
    %1716 = vmatpush1.msra.mxu0 0.0
    %1717 = vmatprep.subr.mxu0 0.0
    %1718 = vmatpush1.msra.mxu0 0.0
    %1719 = vmatprep.subr.mxu0 0.0
    %1720 = vmatpush1.msra.mxu0 0.0
    %1721 = vmatprep.subr.mxu0 0.0
    %1722 = vmatpush1.msra.mxu0 0.0
    %1723 = vmatprep.subr.mxu0 0.0
    %1724 = vmatpush1.msra.mxu0 0.0
    %1725 = vmatprep.subr.mxu0 0.0
    %1726 = vmatpush1.msra.mxu0 0.0
    %1727 = vmatprep.subr.mxu0 0.0
    %1728 = vmatpush1.msra.mxu0 0.0
    %1729 = vmatprep.subr.mxu0 0.0
    %1730 = vmatpush1.msra.mxu0 0.0
    %1731 = vmatprep.subr.mxu0 0.0
    %1732 = vmatpush1.msra.mxu0 0.0
    %1733 = vmatprep.subr.mxu0 0.0
    %1734 = vmatpush1.msra.mxu0 0.0
    %1735 = vmatprep.subr.mxu0 0.0
    %1736 = vmatpush1.msra.mxu0 0.0
    %1737 = vmatprep.subr.mxu0 0.0
    %1738 = vmatpush1.msra.mxu0 0.0
    %1739 = vmatprep.subr.mxu0 0.0
    %1740 = vmatpush1.msra.mxu0 0.0
    %1741 = vmatprep.subr.mxu0 0.0
    %1742 = vmatpush1.msra.mxu0 0.0
    %1743 = vmatprep.subr.mxu0 0.0
    %1744 = vmatpush1.msra.mxu0 0.0
    %1745 = vmatprep.subr.mxu0 0.0
    %1746 = vmatpush1.msra.mxu0 0.0
    %1747 = vmatprep.subr.mxu0 0.0
    %1748 = vmatpush1.msra.mxu0 0.0
    %1749 = vmatprep.subr.mxu0 0.0
    %1750 = vmatpush1.msra.mxu0 0.0
    %1751 = vmatprep.subr.mxu0 0.0
    %1752 = vmatpush1.msra.mxu0 0.0
    %1753 = vmatprep.mubr.f32.mxu0 0.0
    %1754 = vmatmul.mubr.f32.gmra.mrb[0].mxu0 %v1687
    %v1755 = vpop.f32.mrb[0].mxu0
    %v1756 = vadd.f32 0.0, %v1755
    %v1757 = vpop.f32.mrb[0].mxu0
    %1758 = vdwg.mxu0
    %v1760 = vsel %vm1378, %v1463, 0
    %1762 = vmatprep.subr.mxu0 0.0
    %1763 = vmatpush1.msra.mxu0 %v746
    %1764 = vmatprep.subr.mxu0 0.0
    %1765 = vmatpush1.msra.mxu0 %v748
    %1766 = vmatprep.subr.mxu0 0.0
    %1767 = vmatpush1.msra.mxu0 0.0
    %1768 = vmatprep.subr.mxu0 0.0
    %1769 = vmatpush1.msra.mxu0 0.0
    %1770 = vmatprep.subr.mxu0 0.0
    %1771 = vmatpush1.msra.mxu0 0.0
    %1772 = vmatprep.subr.mxu0 0.0
    %1773 = vmatpush1.msra.mxu0 0.0
    %1774 = vmatprep.subr.mxu0 0.0
    %1775 = vmatpush1.msra.mxu0 0.0
    %1776 = vmatprep.subr.mxu0 0.0
    %1777 = vmatpush1.msra.mxu0 0.0
    %1778 = vmatprep.subr.mxu0 0.0
    %1779 = vmatpush1.msra.mxu0 0.0
    %1780 = vmatprep.subr.mxu0 0.0
    %1781 = vmatpush1.msra.mxu0 0.0
    %1782 = vmatprep.subr.mxu0 0.0
    %1783 = vmatpush1.msra.mxu0 0.0
    %1784 = vmatprep.subr.mxu0 0.0
    %1785 = vmatpush1.msra.mxu0 0.0
    %1786 = vmatprep.subr.mxu0 0.0
    %1787 = vmatpush1.msra.mxu0 0.0
    %1788 = vmatprep.subr.mxu0 0.0
    %1789 = vmatpush1.msra.mxu0 0.0
    %1790 = vmatprep.subr.mxu0 0.0
    %1791 = vmatpush1.msra.mxu0 0.0
    %1792 = vmatprep.subr.mxu0 0.0
    %1793 = vmatpush1.msra.mxu0 0.0
    %1794 = vmatprep.subr.mxu0 0.0
    %1795 = vmatpush1.msra.mxu0 0.0
    %1796 = vmatprep.subr.mxu0 0.0
    %1797 = vmatpush1.msra.mxu0 0.0
    %1798 = vmatprep.subr.mxu0 0.0
    %1799 = vmatpush1.msra.mxu0 0.0
    %1800 = vmatprep.subr.mxu0 0.0
    %1801 = vmatpush1.msra.mxu0 0.0
    %1802 = vmatprep.subr.mxu0 0.0
    %1803 = vmatpush1.msra.mxu0 0.0
    %1804 = vmatprep.subr.mxu0 0.0
    %1805 = vmatpush1.msra.mxu0 0.0
    %1806 = vmatprep.subr.mxu0 0.0
    %1807 = vmatpush1.msra.mxu0 0.0
    %1808 = vmatprep.subr.mxu0 0.0
    %1809 = vmatpush1.msra.mxu0 0.0
    %1810 = vmatprep.subr.mxu0 0.0
    %1811 = vmatpush1.msra.mxu0 0.0
    %1812 = vmatprep.subr.mxu0 0.0
    %1813 = vmatpush1.msra.mxu0 0.0
    %1814 = vmatprep.subr.mxu0 0.0
    %1815 = vmatpush1.msra.mxu0 0.0
    %1816 = vmatprep.subr.mxu0 0.0
    %1817 = vmatpush1.msra.mxu0 0.0
    %1818 = vmatprep.subr.mxu0 0.0
    %1819 = vmatpush1.msra.mxu0 0.0
    %1820 = vmatprep.subr.mxu0 0.0
    %1821 = vmatpush1.msra.mxu0 0.0
    %1822 = vmatprep.subr.mxu0 0.0
    %1823 = vmatpush1.msra.mxu0 0.0
    %1824 = vmatprep.subr.mxu0 0.0
    %1825 = vmatpush1.msra.mxu0 0.0
    %1826 = vmatprep.mubr.f32.mxu0 0.0
    %1827 = vmatmul.mubr.f32.gmra.mrb[0].mxu0 %v1760
    %v1828 = vpop.f32.mrb[0].mxu0
    %v1829 = vadd.f32 0.0, %v1828
    %v1830 = vpop.f32.mrb[0].mxu0
    %1831 = vdwg.mxu0
    %v1833 = vsel %vm1378, %v1464, 0
    %1835 = vmatprep.subr.mxu0 0.0
    %1836 = vmatpush1.msra.mxu0 %v750
    %1837 = vmatprep.subr.mxu0 0.0
    %1838 = vmatpush1.msra.mxu0 %v752
    %1839 = vmatprep.subr.mxu0 0.0
    %1840 = vmatpush1.msra.mxu0 0.0
    %1841 = vmatprep.subr.mxu0 0.0
    %1842 = vmatpush1.msra.mxu0 0.0
    %1843 = vmatprep.subr.mxu0 0.0
    %1844 = vmatpush1.msra.mxu0 0.0
    %1845 = vmatprep.subr.mxu0 0.0
    %1846 = vmatpush1.msra.mxu0 0.0
    %1847 = vmatprep.subr.mxu0 0.0
    %1848 = vmatpush1.msra.mxu0 0.0
    %1849 = vmatprep.subr.mxu0 0.0
    %1850 = vmatpush1.msra.mxu0 0.0
    %1851 = vmatprep.subr.mxu0 0.0
    %1852 = vmatpush1.msra.mxu0 0.0
    %1853 = vmatprep.subr.mxu0 0.0
    %1854 = vmatpush1.msra.mxu0 0.0
    %1855 = vmatprep.subr.mxu0 0.0
    %1856 = vmatpush1.msra.mxu0 0.0
    %1857 = vmatprep.subr.mxu0 0.0
    %1858 = vmatpush1.msra.mxu0 0.0
    %1859 = vmatprep.subr.mxu0 0.0
    %1860 = vmatpush1.msra.mxu0 0.0
    %1861 = vmatprep.subr.mxu0 0.0
    %1862 = vmatpush1.msra.mxu0 0.0
    %1863 = vmatprep.subr.mxu0 0.0
    %1864 = vmatpush1.msra.mxu0 0.0
    %1865 = vmatprep.subr.mxu0 0.0
    %1866 = vmatpush1.msra.mxu0 0.0
    %1867 = vmatprep.subr.mxu0 0.0
    %1868 = vmatpush1.msra.mxu0 0.0
    %1869 = vmatprep.subr.mxu0 0.0
    %1870 = vmatpush1.msra.mxu0 0.0
    %1871 = vmatprep.subr.mxu0 0.0
    %1872 = vmatpush1.msra.mxu0 0.0
    %1873 = vmatprep.subr.mxu0 0.0
    %1874 = vmatpush1.msra.mxu0 0.0
    %1875 = vmatprep.subr.mxu0 0.0
    %1876 = vmatpush1.msra.mxu0 0.0
    %1877 = vmatprep.subr.mxu0 0.0
    %1878 = vmatpush1.msra.mxu0 0.0
    %1879 = vmatprep.subr.mxu0 0.0
    %1880 = vmatpush1.msra.mxu0 0.0
    %1881 = vmatprep.subr.mxu0 0.0
    %1882 = vmatpush1.msra.mxu0 0.0
    %1883 = vmatprep.subr.mxu0 0.0
    %1884 = vmatpush1.msra.mxu0 0.0
    %1885 = vmatprep.subr.mxu0 0.0
    %1886 = vmatpush1.msra.mxu0 0.0
    %1887 = vmatprep.subr.mxu0 0.0
    %1888 = vmatpush1.msra.mxu0 0.0
    %1889 = vmatprep.subr.mxu0 0.0
    %1890 = vmatpush1.msra.mxu0 0.0
    %1891 = vmatprep.subr.mxu0 0.0
    %1892 = vmatpush1.msra.mxu0 0.0
    %1893 = vmatprep.subr.mxu0 0.0
    %1894 = vmatpush1.msra.mxu0 0.0
    %1895 = vmatprep.subr.mxu0 0.0
    %1896 = vmatpush1.msra.mxu0 0.0
    %1897 = vmatprep.subr.mxu0 0.0
    %1898 = vmatpush1.msra.mxu0 0.0
    %1899 = vmatprep.mubr.f32.mxu0 0.0
    %1900 = vmatmul.mubr.f32.gmra.mrb[0].mxu0 %v1833
    %v1901 = vpop.f32.mrb[0].mxu0
    %v1902 = vadd.f32 0.0, %v1901
    %v1903 = vpop.f32.mrb[0].mxu0
    %1904 = vdwg.mxu0
    %v1906 = vsel %vm1378, %v1465, 0
    %1908 = vmatprep.subr.mxu0 0.0
    %1909 = vmatpush1.msra.mxu0 %v758
    %1910 = vmatprep.subr.mxu0 0.0
    %1911 = vmatpush1.msra.mxu0 %v760
    %1912 = vmatprep.subr.mxu0 0.0
    %1913 = vmatpush1.msra.mxu0 0.0
    %1914 = vmatprep.subr.mxu0 0.0
    %1915 = vmatpush1.msra.mxu0 0.0
    %1916 = vmatprep.subr.mxu0 0.0
    %1917 = vmatpush1.msra.mxu0 0.0
    %1918 = vmatprep.subr.mxu0 0.0
    %1919 = vmatpush1.msra.mxu0 0.0
    %1920 = vmatprep.subr.mxu0 0.0
    %1921 = vmatpush1.msra.mxu0 0.0
    %1922 = vmatprep.subr.mxu0 0.0
    %1923 = vmatpush1.msra.mxu0 0.0
    %1924 = vmatprep.subr.mxu0 0.0
    %1925 = vmatpush1.msra.mxu0 0.0
    %1926 = vmatprep.subr.mxu0 0.0
    %1927 = vmatpush1.msra.mxu0 0.0
    %1928 = vmatprep.subr.mxu0 0.0
    %1929 = vmatpush1.msra.mxu0 0.0
    %1930 = vmatprep.subr.mxu0 0.0
    %1931 = vmatpush1.msra.mxu0 0.0
    %1932 = vmatprep.subr.mxu0 0.0
    %1933 = vmatpush1.msra.mxu0 0.0
    %1934 = vmatprep.subr.mxu0 0.0
    %1935 = vmatpush1.msra.mxu0 0.0
    %1936 = vmatprep.subr.mxu0 0.0
    %1937 = vmatpush1.msra.mxu0 0.0
    %1938 = vmatprep.subr.mxu0 0.0
    %1939 = vmatpush1.msra.mxu0 0.0
    %1940 = vmatprep.subr.mxu0 0.0
    %1941 = vmatpush1.msra.mxu0 0.0
    %1942 = vmatprep.subr.mxu0 0.0
    %1943 = vmatpush1.msra.mxu0 0.0
    %1944 = vmatprep.subr.mxu0 0.0
    %1945 = vmatpush1.msra.mxu0 0.0
    %1946 = vmatprep.subr.mxu0 0.0
    %1947 = vmatpush1.msra.mxu0 0.0
    %1948 = vmatprep.subr.mxu0 0.0
    %1949 = vmatpush1.msra.mxu0 0.0
    %1950 = vmatprep.subr.mxu0 0.0
    %1951 = vmatpush1.msra.mxu0 0.0
    %1952 = vmatprep.subr.mxu0 0.0
    %1953 = vmatpush1.msra.mxu0 0.0
    %1954 = vmatprep.subr.mxu0 0.0
    %1955 = vmatpush1.msra.mxu0 0.0
    %1956 = vmatprep.subr.mxu0 0.0
    %1957 = vmatpush1.msra.mxu0 0.0
    %1958 = vmatprep.subr.mxu0 0.0
    %1959 = vmatpush1.msra.mxu0 0.0
    %1960 = vmatprep.subr.mxu0 0.0
    %1961 = vmatpush1.msra.mxu0 0.0
    %1962 = vmatprep.subr.mxu0 0.0
    %1963 = vmatpush1.msra.mxu0 0.0
    %1964 = vmatprep.subr.mxu0 0.0
    %1965 = vmatpush1.msra.mxu0 0.0
    %1966 = vmatprep.subr.mxu0 0.0
    %1967 = vmatpush1.msra.mxu0 0.0
    %1968 = vmatprep.subr.mxu0 0.0
    %1969 = vmatpush1.msra.mxu0 0.0
    %1970 = vmatprep.subr.mxu0 0.0
    %1971 = vmatpush1.msra.mxu0 0.0
    %1972 = vmatprep.mubr.f32.mxu0 0.0
    %1973 = vmatmul.mubr.f32.gmra.mrb[0].mxu0 %v1906
    %v1974 = vpop.f32.mrb[0].mxu0
    %v1975 = vadd.f32 0.0, %v1974
    %v1976 = vpop.f32.mrb[0].mxu0
    %1977 = vdwg.mxu0
    %v1979 = vsel %vm1378, %v1466, 0
    %1981 = vmatprep.subr.mxu0 0.0
    %1982 = vmatpush1.msra.mxu0 %v762
    %1983 = vmatprep.subr.mxu0 0.0
    %1984 = vmatpush1.msra.mxu0 %v764
    %1985 = vmatprep.subr.mxu0 0.0
    %1986 = vmatpush1.msra.mxu0 0.0
    %1987 = vmatprep.subr.mxu0 0.0
    %1988 = vmatpush1.msra.mxu0 0.0
    %1989 = vmatprep.subr.mxu0 0.0
    %1990 = vmatpush1.msra.mxu0 0.0
    %1991 = vmatprep.subr.mxu0 0.0
    %1992 = vmatpush1.msra.mxu0 0.0
    %1993 = vmatprep.subr.mxu0 0.0
    %1994 = vmatpush1.msra.mxu0 0.0
    %1995 = vmatprep.subr.mxu0 0.0
    %1996 = vmatpush1.msra.mxu0 0.0
    %1997 = vmatprep.subr.mxu0 0.0
    %1998 = vmatpush1.msra.mxu0 0.0
    %1999 = vmatprep.subr.mxu0 0.0
    %2000 = vmatpush1.msra.mxu0 0.0
    %2001 = vmatprep.subr.mxu0 0.0
    %2002 = vmatpush1.msra.mxu0 0.0
    %2003 = vmatprep.subr.mxu0 0.0
    %2004 = vmatpush1.msra.mxu0 0.0
    %2005 = vmatprep.subr.mxu0 0.0
    %2006 = vmatpush1.msra.mxu0 0.0
    %2007 = vmatprep.subr.mxu0 0.0
    %2008 = vmatpush1.msra.mxu0 0.0
    %2009 = vmatprep.subr.mxu0 0.0
    %2010 = vmatpush1.msra.mxu0 0.0
    %2011 = vmatprep.subr.mxu0 0.0
    %2012 = vmatpush1.msra.mxu0 0.0
    %2013 = vmatprep.subr.mxu0 0.0
    %2014 = vmatpush1.msra.mxu0 0.0
    %2015 = vmatprep.subr.mxu0 0.0
    %2016 = vmatpush1.msra.mxu0 0.0
    %2017 = vmatprep.subr.mxu0 0.0
    %2018 = vmatpush1.msra.mxu0 0.0
    %2019 = vmatprep.subr.mxu0 0.0
    %2020 = vmatpush1.msra.mxu0 0.0
    %2021 = vmatprep.subr.mxu0 0.0
    %2022 = vmatpush1.msra.mxu0 0.0
    %2023 = vmatprep.subr.mxu0 0.0
    %2024 = vmatpush1.msra.mxu0 0.0
    %2025 = vmatprep.subr.mxu0 0.0
    %2026 = vmatpush1.msra.mxu0 0.0
    %2027 = vmatprep.subr.mxu0 0.0
    %2028 = vmatpush1.msra.mxu0 0.0
    %2029 = vmatprep.subr.mxu0 0.0
    %2030 = vmatpush1.msra.mxu0 0.0
    %2031 = vmatprep.subr.mxu0 0.0
    %2032 = vmatpush1.msra.mxu0 0.0
    %2033 = vmatprep.subr.mxu0 0.0
    %2034 = vmatpush1.msra.mxu0 0.0
    %2035 = vmatprep.subr.mxu0 0.0
    %2036 = vmatpush1.msra.mxu0 0.0
    %2037 = vmatprep.subr.mxu0 0.0
    %2038 = vmatpush1.msra.mxu0 0.0
    %2039 = vmatprep.subr.mxu0 0.0
    %2040 = vmatpush1.msra.mxu0 0.0
    %2041 = vmatprep.subr.mxu0 0.0
    %2042 = vmatpush1.msra.mxu0 0.0
    %2043 = vmatprep.subr.mxu0 0.0
    %2044 = vmatpush1.msra.mxu0 0.0
    %2045 = vmatprep.mubr.f32.mxu0 0.0
    %2046 = vmatmul.mubr.f32.gmra.mrb[0].mxu0 %v1979
    %v2047 = vpop.f32.mrb[0].mxu0
    %v2048 = vadd.f32 0.0, %v2047
    %v2049 = vpop.f32.mrb[0].mxu0
    %2050 = vdwg.mxu0
    %2051 = vst.msk [vmem:[#allocation2] sm:$0xff] %vm769, %v1537
    %2052 = vst.msk [vmem:[#allocation2 + $0x8] sm:$0xff] %vm769, %v1610
    %2055 = vrot.lane.b32.xlu0 %v1683, 8
    %v2056 = vpop.permute.xlu0 %2055
    %2057 = vrot.lane.b32.xlu0 %v1756, 8
    %v2058 = vpop.permute.xlu0 %2057
    %vm2061 = vcmask 130112
    %2062 = vst.msk [vmem:[#allocation2] sm:$0xff] %vm2061, %v2056
    %2063 = vst.msk [vmem:[#allocation2 + $0x8] sm:$0xff] %vm2061, %v2058
    %2066 = vrot.lane.b32.xlu0 %v1829, 16
    %v2067 = vpop.permute.xlu0 %2066
    %2068 = vrot.lane.b32.xlu0 %v1902, 16
    %v2069 = vpop.permute.xlu0 %2068
    %vm2072 = vcmask 195712
    %2073 = vst.msk [vmem:[#allocation2] sm:$0xff] %vm2072, %v2067
    %2074 = vst.msk [vmem:[#allocation2 + $0x8] sm:$0xff] %vm2072, %v2069
    %2077 = vrot.lane.b32.xlu0 %v1975, 24
    %v2078 = vpop.permute.xlu0 %2077
    %2079 = vrot.lane.b32.xlu0 %v2048, 24
    %v2080 = vpop.permute.xlu0 %2079
    %vm2083 = vcmask 261312
    %2084 = vst.msk [vmem:[#allocation2] sm:$0xff] %vm2083, %v2078
    %2085 = vst.msk [vmem:[#allocation2 + $0x8] sm:$0xff] %vm2083, %v2080
    %v2086 = vld [vmem:[#allocation2] sm:$0xff]
    %v2087 = vld [vmem:[#allocation2 + $0x8] sm:$0xff]
    %v2088 = vld [vmem:[#allocation15] sm:$0xff]
    %v2089 = vld [vmem:[#allocation15 + $0x8] sm:$0xff]
    %v2090 = vld [vmem:[#allocation15 + $0x10] sm:$0xff]
    %v2091 = vld [vmem:[#allocation15 + $0x18] sm:$0xff]
    %v2092 = vld [vmem:[%s17] sm:$0x1]
    %v2094 = vlaneseq
    %v2095 = vshrl.u32 %v2094, 7
    %v2096 = vsub.s32 0, %v2095
    %v2097 = vrot.slane %v2092, %v2096
    %v2100 = vsel %vm183, %v2086, 0
    %v2103 = vsel %vm183, %v2087, 0
    %2105 = vmatprep.subr.mxu0 0.0
    %2106 = vmatpush1.msra.mxu0 %v2088
    %2107 = vmatprep.subr.mxu0 0.0
    %2108 = vmatpush1.msra.mxu0 %v2089
    %2109 = vmatprep.subr.mxu0 0.0
    %2110 = vmatpush1.msra.mxu0 %v2090
    %2111 = vmatprep.subr.mxu0 0.0
    %2112 = vmatpush1.msra.mxu0 %v2091
    %2113 = vmatprep.subr.mxu0 0.0
    %2114 = vmatpush1.msra.mxu0 0.0
    %2115 = vmatprep.subr.mxu0 0.0
    %2116 = vmatpush1.msra.mxu0 0.0
    %2117 = vmatprep.subr.mxu0 0.0
    %2118 = vmatpush1.msra.mxu0 0.0
    %2119 = vmatprep.subr.mxu0 0.0
    %2120 = vmatpush1.msra.mxu0 0.0
    %2121 = vmatprep.subr.mxu0 0.0
    %2122 = vmatpush1.msra.mxu0 0.0
    %2123 = vmatprep.subr.mxu0 0.0
    %2124 = vmatpush1.msra.mxu0 0.0
    %2125 = vmatprep.subr.mxu0 0.0
    %2126 = vmatpush1.msra.mxu0 0.0
    %2127 = vmatprep.subr.mxu0 0.0
    %2128 = vmatpush1.msra.mxu0 0.0
    %2129 = vmatprep.subr.mxu0 0.0
    %2130 = vmatpush1.msra.mxu0 0.0
    %2131 = vmatprep.subr.mxu0 0.0
    %2132 = vmatpush1.msra.mxu0 0.0
    %2133 = vmatprep.subr.mxu0 0.0
    %2134 = vmatpush1.msra.mxu0 0.0
    %2135 = vmatprep.subr.mxu0 0.0
    %2136 = vmatpush1.msra.mxu0 0.0
    %2137 = vmatprep.subr.mxu0 0.0
    %2138 = vmatpush1.msra.mxu0 0.0
    %2139 = vmatprep.subr.mxu0 0.0
    %2140 = vmatpush1.msra.mxu0 0.0
    %2141 = vmatprep.subr.mxu0 0.0
    %2142 = vmatpush1.msra.mxu0 0.0
    %2143 = vmatprep.subr.mxu0 0.0
    %2144 = vmatpush1.msra.mxu0 0.0
    %2145 = vmatprep.subr.mxu0 0.0
    %2146 = vmatpush1.msra.mxu0 0.0
    %2147 = vmatprep.subr.mxu0 0.0
    %2148 = vmatpush1.msra.mxu0 0.0
    %2149 = vmatprep.subr.mxu0 0.0
    %2150 = vmatpush1.msra.mxu0 0.0
    %2151 = vmatprep.subr.mxu0 0.0
    %2152 = vmatpush1.msra.mxu0 0.0
    %2153 = vmatprep.subr.mxu0 0.0
    %2154 = vmatpush1.msra.mxu0 0.0
    %2155 = vmatprep.subr.mxu0 0.0
    %2156 = vmatpush1.msra.mxu0 0.0
    %2157 = vmatprep.subr.mxu0 0.0
    %2158 = vmatpush1.msra.mxu0 0.0
    %2159 = vmatprep.subr.mxu0 0.0
    %2160 = vmatpush1.msra.mxu0 0.0
    %2161 = vmatprep.subr.mxu0 0.0
    %2162 = vmatpush1.msra.mxu0 0.0
    %2163 = vmatprep.subr.mxu0 0.0
    %2164 = vmatpush1.msra.mxu0 0.0
    %2165 = vmatprep.subr.mxu0 0.0
    %2166 = vmatpush1.msra.mxu0 0.0
    %2167 = vmatprep.subr.mxu0 0.0
    %2168 = vmatpush1.msra.mxu0 0.0
    %2169 = vmatprep.mubr.f32.mxu0 0.0
    %2170 = vmatmul.mubr.f32.gmra.mrb[0].mxu0 %v2100
    %v2171 = vpop.f32.mrb[0].mxu0
    %v2172 = vadd.f32 %v2097, %v2171
    %v2173 = vpop.f32.mrb[0].mxu0
    %2174 = vmatprep.mubr.f32.mxu0 0.0
    %2175 = vmatmul.mubr.f32.gmra.mrb[0].mxu0 %v2103
    %v2176 = vpop.f32.mrb[0].mxu0
    %v2177 = vadd.f32 %v2097, %v2176
    %v2178 = vpop.f32.mrb[0].mxu0
    %2179 = vdwg.mxu0
    %2180 = vst.msk [vmem:[#allocation17] sm:$0xff] %vm183, %v2172
    %2181 = vst.msk [vmem:[#allocation17 + $0x8] sm:$0xff] %vm183, %v2177
    // Predicated region
    $region106: #{tpu_custom_call.1} parent=1 // pred_check
      _
    $region107: #{tpu_custom_call.1} parent=1 // pred_check_branch
      %2183 = sbr.rel (0) target = $region109
    $region108: #{tpu_custom_call.1} parent=1 // pred_region
      %s2185 = ssub.s32 256, 256
      %2186 = vsyncadd [#allocation5], %s2185
      %s2187 = sshll.u32 [#allocation17], 4
      %s2188 = int_to_ptr.vmem [resolvable:$true] %s2187
      %2193 = dma.vmem_to_hbm [thread:$0]  %s2188, 256, %s18, [#allocation5], 128, 128, 8
    $region109: #{tpu_custom_call.1} parent=1 // pred_fallthru
      _
    // Predicated region
    $region110: #{tpu_custom_call.1} parent=1 // pred_check
      _
    $region111: #{tpu_custom_call.1} parent=1 // pred_check_branch
      %2195 = sbr.rel (0) target = $region113
    $region112: #{tpu_custom_call.1} parent=1 // pred_region
      %2196 = dma.done [#allocation5], 256
    $region113: #{tpu_custom_call.1} parent=1 // pred_fallthru
      _
    %2197 = vsyncpa [#allocation4], 1
    %2198 = vsyncpa [#allocation7], 1
    %2199 = vsyncpa [#allocation10], 1
    %2200 = vsyncpa [#allocation13], 1
    %2201 = vsyncpa [#allocation16], 1
    %2202 = vsyncpa [#allocation5], 1

</llo_original>
